<compile_context>
chip_gen: v7x
topology: tpu7x:2x2x1
jax: 0.10.0
libtpu: 0.0.40
codegen_flags: <defaults>
</compile_context>

<pallas_src>
import jax
import jax.numpy as jnp
from jax.experimental import pallas as pl
from jax.experimental.pallas import tpu as pltpu


def _seltgcn_kernel(sel_ref, x_ref, h_ref, wf_ref, bf_ref, whzr_ref, whh_ref, out_ref):
    N = x_ref.shape[1]          # total nodes (gather source)
    K = sel_ref.shape[2]        # selection_count
    C = h_ref.shape[2]          # out_channels

    sel = sel_ref[0]            # (TM, K) int32 neighbour indices for this node tile
    X = x_ref[0]                # (N, C_in) full node features of this batch element
    H = h_ref[0]                # (TM, C)

    TM = sel.shape[0]

    # Build the (TM, N) selection-count matrix from raw indices — no dense S DMA.
    col = jax.lax.broadcasted_iota(jnp.int32, (TM, N), 1)
    onehot = jnp.zeros((TM, N), jnp.float32)
    for k in range(K):                                    # K is tiny and static
        onehot = onehot + jnp.where(col == sel[:, k:k + 1], 1.0, 0.0)

    # Mean aggregation over selected neighbours (duplicates weighted, as in the reference).
    agg = jnp.dot(onehot, X, preferred_element_type=jnp.float32) * (1.0 / K)   # (TM, C_in)

    # Fused conv+gate projection for all three gates in one lane-dense matmul.
    convs = jnp.dot(agg, wf_ref[...], preferred_element_type=jnp.float32) + bf_ref[...]  # (TM, 3C)

    # Update & reset gates share one stacked hidden-side matmul.
    zr = jax.nn.sigmoid(
        convs[:, :2 * C]
        + jnp.dot(H, whzr_ref[...], preferred_element_type=jnp.float32))       # (TM, 2C)
    Z = zr[:, :C]
    R = zr[:, C:]

    # Candidate state (hidden side uses H * R, so it cannot be stacked with Z/R).
    h_tilde = jnp.tanh(
        convs[:, 2 * C:]
        + jnp.dot(H * R, whh_ref[...], preferred_element_type=jnp.float32))    # (TM, C)

    out_ref[0] = (Z * H + (1.0 - Z) * h_tilde).astype(out_ref.dtype)


def _pick_node_tile(N, max_tile=256):
    """Largest tile <= max_tile that divides N and satisfies the (8,128) block rule."""
    if N <= max_tile:
        return N
    best = None
    for t in range(8, max_tile + 1, 8):
        if N % t == 0:
            best = t
    return best if best is not None else N


def seltgcn_forward(X, selections, Wc, bc, Wl, bl, H=None, *, node_tile=None):
    """X: (B, N, C_in) f32; selections: (B, N, K) int indices into [0, N)."""
    B, N, C_in = X.shape
    C = Wc.shape[-1]
    K = selections.shape[-1]
    if H is None:
        H = jnp.zeros((B, N, C), dtype=X.dtype)

    # ---- Algebraic weight fusion (done once, outside the kernel) -----------------
    Wl_c = Wl[:, :C, :]                                     # conv-side half  (3, C, C)
    Wl_h = Wl[:, C:, :]                                     # hidden-side half (3, C, C)
    W_fused = jnp.einsum('gic,gco->gio', Wc, Wl_c)          # (3, C_in, C)
    b_fused = jnp.einsum('gxc,gco->gxo', bc, Wl_c) + bl     # (3, 1, C)
    W_fused = jnp.transpose(W_fused, (1, 0, 2)).reshape(C_in, 3 * C)   # [z | r | h]
    b_fused = jnp.transpose(b_fused, (1, 0, 2)).reshape(1, 3 * C)
    Wh_zr = jnp.concatenate([Wl_h[0], Wl_h[1]], axis=-1)    # (C, 2C)
    Wh_h = Wl_h[2]                                          # (C, C)

    tm = node_tile if node_tile is not None else _pick_node_tile(N)
    assert N % tm == 0 and (tm == N or tm % 8 == 0), "node tile must divide N, mult of 8"
    grid = (B, N // tm)

    selections = selections.astype(jnp.int32)

    batch_tile = lambda c: pl.BlockSpec((1, tm, c), lambda b, m: (b, m, 0))
    full_batch = lambda c: pl.BlockSpec((1, N, c), lambda b, m: (b, 0, 0))
    shared2d = lambda r, c: pl.BlockSpec((r, c), lambda b, m: (0, 0))

    return pl.pallas_call(
        _seltgcn_kernel,
        out_shape=jax.ShapeDtypeStruct((B, N, C), X.dtype),
        grid_spec=pltpu.PrefetchScalarGridSpec(
            num_scalar_prefetch=0,
            grid=grid,
            in_specs=[
                batch_tile(K),           # selections tile (raw indices, no dense S)
                full_batch(C_in),        # X: full node features of the batch element
                batch_tile(C),           # H tile
                shared2d(C_in, 3 * C),   # fused conv+gate weights
                shared2d(1, 3 * C),      # fused biases
                shared2d(C, 2 * C),      # hidden-side weights for Z | R
                shared2d(C, C),          # hidden-side weights for candidate
            ],
            out_specs=batch_tile(C),
        ),
        compiler_params=pltpu.CompilerParams(
            dimension_semantics=("parallel", "parallel"),
            vmem_limit_bytes=48 * 1024 * 1024,
        ),
    )(selections, X, H, W_fused, b_fused, Wh_zr, Wh_h)


def seltgcn_reference(X, selections, Wc, bc, Wl, bl, H=None):
    """Pure-JAX reference mirroring the PyTorch forward (unfused)."""
    B, N, _ = X.shape
    C = Wc.shape[-1]
    if H is None:
        H = jnp.zeros((B, N, C), dtype=X.dtype)
    batch_idx = jnp.arange(B)[:, None, None]
    gathered = X[batch_idx, selections]                 # (B, N, K, C_in)
    agg = jnp.mean(gathered, axis=2)                    # (B, N, C_in)

    def conv(i):
        return agg @ Wc[i] + bc[i]

    def lin(i, c, h):
        return jnp.concatenate([c, h], axis=-1) @ Wl[i] + bl[i]

    Z = jax.nn.sigmoid(lin(0, conv(0), H))
    R = jax.nn.sigmoid(lin(1, conv(1), H))
    H_tilde = jnp.tanh(lin(2, conv(2), H * R))
    return Z * H + (1.0 - Z) * H_tilde


if __name__ == "__main__":
    jax.config.update("jax_default_matmul_precision", "highest")

    # Small, forward-consistent shapes.
    B, N = 2, 16            # batch, number of graph nodes
    C_in, C_out = 4, 32     # in_channels, out_channels
    K = 4                   # selection_count

    key = jax.random.PRNGKey(0)
    kx, ks, kwc, kbc, kwl, kbl = jax.random.split(key, 6)

    X = jax.random.normal(kx, (B, N, C_in), dtype=jnp.float32)
    selections = jax.random.randint(ks, (B, N, K), 0, N, dtype=jnp.int32)

    # Deterministic parameter init (PyTorch-Linear-style uniform bounds).
    conv_bound = 1.0 / jnp.sqrt(jnp.float32(C_in))
    lin_bound = 1.0 / jnp.sqrt(jnp.float32(2 * C_out))
    Wc = jax.random.uniform(kwc, (3, C_in, C_out), jnp.float32, -conv_bound, conv_bound)
    bc = jax.random.uniform(kbc, (3, 1, C_out), jnp.float32, -conv_bound, conv_bound)
    Wl = jax.random.uniform(kwl, (3, 2 * C_out, C_out), jnp.float32, -lin_bound, lin_bound)
    bl = jax.random.uniform(kbl, (3, 1, C_out), jnp.float32, -lin_bound, lin_bound)

    # node_tile=8 exercises the (batch, node-tile) grid at this small N.
    H_out = seltgcn_forward(X, selections, Wc, bc, Wl, bl, H=None, node_tile=8)
    H_out = jax.block_until_ready(H_out)

    H_ref = seltgcn_reference(X, selections, Wc, bc, Wl, bl, H=None)
    assert H_out.shape == (B, N, C_out)
    # Fused-weight path reassociates the f32 matmuls -> tolerance slightly relaxed.
    assert jnp.allclose(H_out, H_ref, atol=1e-4, rtol=1e-4), "mismatch vs reference"

    print("KERNEL_OK")
</pallas_src>

<mosaic_0001>
module attributes {stable_mosaic.version = 11 : i64} {
  func.func @_seltgcn_kernel(%arg0: i32, %arg1: i32, %arg2: memref<1x8x4xi32, #tpu.memory_space<vmem>>, %arg3: memref<1x16x4xf32, #tpu.memory_space<vmem>>, %arg4: memref<1x8x32xf32, #tpu.memory_space<vmem>>, %arg5: memref<4x96xf32, #tpu.memory_space<vmem>>, %arg6: memref<1x96xf32, #tpu.memory_space<vmem>>, %arg7: memref<32x64xf32, #tpu.memory_space<vmem>>, %arg8: memref<32x32xf32, #tpu.memory_space<vmem>>, %arg9: memref<1x8x32xf32, #tpu.memory_space<vmem>>) attributes {dimension_semantics = [#tpu.dimension_semantics<parallel>, #tpu.dimension_semantics<parallel>], iteration_bounds = array<i64: 2, 2>, scalar_prefetch = 0 : i64, scratch_operands = 0 : i64, tpu.core_type = #tpu.core_type<tc>, window_params = [{transform_indices = @transform_0, window_bounds = array<i64: 1, 8, 4>}, {transform_indices = @transform_1, window_bounds = array<i64: 1, 16, 4>}, {transform_indices = @transform_2, window_bounds = array<i64: 1, 8, 32>}, {pipeline_mode = #tpu.pipeline_mode<synchronous>, transform_indices = @transform_3, window_bounds = array<i64: 4, 96>}, {pipeline_mode = #tpu.pipeline_mode<synchronous>, transform_indices = @transform_4, window_bounds = array<i64: 1, 96>}, {pipeline_mode = #tpu.pipeline_mode<synchronous>, transform_indices = @transform_5, window_bounds = array<i64: 32, 64>}, {pipeline_mode = #tpu.pipeline_mode<synchronous>, transform_indices = @transform_6, window_bounds = array<i64: 32, 32>}, {transform_indices = @transform_7, window_bounds = array<i64: 1, 8, 32>}]} {
    %c0 = arith.constant 0 : index
    %c0_0 = arith.constant 0 : index
    %c0_1 = arith.constant 0 : index
    %0 = vector.load %arg2[%c0, %c0_0, %c0_1] : memref<1x8x4xi32, #tpu.memory_space<vmem>>, vector<1x8x4xi32>
    %1 = vector.shape_cast %0 : vector<1x8x4xi32> to vector<8x4xi32>
    %c0_2 = arith.constant 0 : index
    %c0_3 = arith.constant 0 : index
    %c0_4 = arith.constant 0 : index
    %2 = vector.load %arg3[%c0_2, %c0_3, %c0_4] : memref<1x16x4xf32, #tpu.memory_space<vmem>>, vector<1x16x4xf32>
    %3 = vector.shape_cast %2 : vector<1x16x4xf32> to vector<16x4xf32>
    %c0_5 = arith.constant 0 : index
    %c0_6 = arith.constant 0 : index
    %c0_7 = arith.constant 0 : index
    %4 = vector.load %arg4[%c0_5, %c0_6, %c0_7] : memref<1x8x32xf32, #tpu.memory_space<vmem>>, vector<1x8x32xf32>
    %5 = vector.shape_cast %4 : vector<1x8x32xf32> to vector<8x32xf32>
    %6 = tpu.iota {dimensions = array<i32: 1>} : vector<8x16xi32>
    %cst = arith.constant 0.000000e+00 : f32
    %7 = vector.broadcast %cst : f32 to vector<8x16xf32>
    %8 = vector.extract_strided_slice %1 {offsets = [0, 0], sizes = [8, 1], strides = [1, 1]} : vector<8x4xi32> to vector<8x1xi32>
    %9 = vector.broadcast %8 : vector<8x1xi32> to vector<8x16xi32>
    %10 = arith.cmpi eq, %6, %9 : vector<8x16xi32>
    %cst_8 = arith.constant 1.000000e+00 : f32
    %cst_9 = arith.constant 0.000000e+00 : f32
    %11 = vector.broadcast %cst_8 : f32 to vector<8x16xf32>
    %12 = vector.broadcast %cst_9 : f32 to vector<8x16xf32>
    %13 = arith.select %10, %11, %12 : vector<8x16xi1>, vector<8x16xf32>
    %14 = arith.addf %7, %13 : vector<8x16xf32>
    %15 = vector.extract_strided_slice %1 {offsets = [0, 1], sizes = [8, 1], strides = [1, 1]} : vector<8x4xi32> to vector<8x1xi32>
    %16 = vector.broadcast %15 : vector<8x1xi32> to vector<8x16xi32>
    %17 = arith.cmpi eq, %6, %16 : vector<8x16xi32>
    %cst_10 = arith.constant 1.000000e+00 : f32
    %cst_11 = arith.constant 0.000000e+00 : f32
    %18 = vector.broadcast %cst_10 : f32 to vector<8x16xf32>
    %19 = vector.broadcast %cst_11 : f32 to vector<8x16xf32>
    %20 = arith.select %17, %18, %19 : vector<8x16xi1>, vector<8x16xf32>
    %21 = arith.addf %14, %20 : vector<8x16xf32>
    %22 = vector.extract_strided_slice %1 {offsets = [0, 2], sizes = [8, 1], strides = [1, 1]} : vector<8x4xi32> to vector<8x1xi32>
    %23 = vector.broadcast %22 : vector<8x1xi32> to vector<8x16xi32>
    %24 = arith.cmpi eq, %6, %23 : vector<8x16xi32>
    %cst_12 = arith.constant 1.000000e+00 : f32
    %cst_13 = arith.constant 0.000000e+00 : f32
    %25 = vector.broadcast %cst_12 : f32 to vector<8x16xf32>
    %26 = vector.broadcast %cst_13 : f32 to vector<8x16xf32>
    %27 = arith.select %24, %25, %26 : vector<8x16xi1>, vector<8x16xf32>
    %28 = arith.addf %21, %27 : vector<8x16xf32>
    %29 = vector.extract_strided_slice %1 {offsets = [0, 3], sizes = [8, 1], strides = [1, 1]} : vector<8x4xi32> to vector<8x1xi32>
    %30 = vector.broadcast %29 : vector<8x1xi32> to vector<8x16xi32>
    %31 = arith.cmpi eq, %6, %30 : vector<8x16xi32>
    %cst_14 = arith.constant 1.000000e+00 : f32
    %cst_15 = arith.constant 0.000000e+00 : f32
    %32 = vector.broadcast %cst_14 : f32 to vector<8x16xf32>
    %33 = vector.broadcast %cst_15 : f32 to vector<8x16xf32>
    %34 = arith.select %31, %32, %33 : vector<8x16xi1>, vector<8x16xf32>
    %35 = arith.addf %28, %34 : vector<8x16xf32>
    %cst_16 = arith.constant dense<0.000000e+00> : vector<8x4xf32>
    %36 = tpu.matmul %35, %3, %cst_16 {dimension_numbers = #tpu.dot_dimension_numbers<[1], [0], [0], [1], [0, 0, 1, 1], [], []>, precision = #tpu.contract_precision<fp32>} : vector<8x16xf32>, vector<16x4xf32>, vector<8x4xf32> -> vector<8x4xf32>
    %cst_17 = arith.constant 2.500000e-01 : f32
    %37 = vector.broadcast %cst_17 : f32 to vector<8x4xf32>
    %38 = arith.mulf %36, %37 : vector<8x4xf32>
    %c0_18 = arith.constant 0 : index
    %c0_19 = arith.constant 0 : index
    %39 = vector.load %arg5[%c0_18, %c0_19] : memref<4x96xf32, #tpu.memory_space<vmem>>, vector<4x96xf32>
    %cst_20 = arith.constant dense<0.000000e+00> : vector<8x96xf32>
    %40 = tpu.matmul %38, %39, %cst_20 {dimension_numbers = #tpu.dot_dimension_numbers<[1], [0], [0], [1], [0, 0, 1, 1], [], []>, precision = #tpu.contract_precision<fp32>} : vector<8x4xf32>, vector<4x96xf32>, vector<8x96xf32> -> vector<8x96xf32>
    %c0_21 = arith.constant 0 : index
    %c0_22 = arith.constant 0 : index
    %41 = vector.load %arg6[%c0_21, %c0_22] : memref<1x96xf32, #tpu.memory_space<vmem>>, vector<1x96xf32>
    %42 = vector.broadcast %41 : vector<1x96xf32> to vector<8x96xf32>
    %43 = arith.addf %40, %42 : vector<8x96xf32>
    %44 = vector.extract_strided_slice %43 {offsets = [0, 0], sizes = [8, 64], strides = [1, 1]} : vector<8x96xf32> to vector<8x64xf32>
    %c0_23 = arith.constant 0 : index
    %c0_24 = arith.constant 0 : index
    %45 = vector.load %arg7[%c0_23, %c0_24] : memref<32x64xf32, #tpu.memory_space<vmem>>, vector<32x64xf32>
    %cst_25 = arith.constant dense<0.000000e+00> : vector<8x64xf32>
    %46 = tpu.matmul %5, %45, %cst_25 {dimension_numbers = #tpu.dot_dimension_numbers<[1], [0], [0], [1], [0, 0, 1, 1], [], []>, precision = #tpu.contract_precision<fp32>} : vector<8x32xf32>, vector<32x64xf32>, vector<8x64xf32> -> vector<8x64xf32>
    %47 = arith.addf %44, %46 : vector<8x64xf32>
    %48 = arith.negf %47 : vector<8x64xf32>
    %49 = math.exp %48 : vector<8x64xf32>
    %cst_26 = arith.constant 1.000000e+00 : f32
    %50 = vector.broadcast %cst_26 : f32 to vector<8x64xf32>
    %51 = arith.addf %50, %49 : vector<8x64xf32>
    %52 = arith.divf %50, %51 : vector<8x64xf32>
    %53 = vector.extract_strided_slice %52 {offsets = [0, 0], sizes = [8, 32], strides = [1, 1]} : vector<8x64xf32> to vector<8x32xf32>
    %54 = vector.extract_strided_slice %52 {offsets = [0, 32], sizes = [8, 32], strides = [1, 1]} : vector<8x64xf32> to vector<8x32xf32>
    %55 = vector.extract_strided_slice %43 {offsets = [0, 64], sizes = [8, 32], strides = [1, 1]} : vector<8x96xf32> to vector<8x32xf32>
    %56 = arith.mulf %5, %54 : vector<8x32xf32>
    %c0_27 = arith.constant 0 : index
    %c0_28 = arith.constant 0 : index
    %57 = vector.load %arg8[%c0_27, %c0_28] : memref<32x32xf32, #tpu.memory_space<vmem>>, vector<32x32xf32>
    %cst_29 = arith.constant dense<0.000000e+00> : vector<8x32xf32>
    %58 = tpu.matmul %56, %57, %cst_29 {dimension_numbers = #tpu.dot_dimension_numbers<[1], [0], [0], [1], [0, 0, 1, 1], [], []>, precision = #tpu.contract_precision<fp32>} : vector<8x32xf32>, vector<32x32xf32>, vector<8x32xf32> -> vector<8x32xf32>
    %59 = arith.addf %55, %58 : vector<8x32xf32>
    %60 = math.tanh %59 : vector<8x32xf32>
    %61 = arith.mulf %53, %5 : vector<8x32xf32>
    %cst_30 = arith.constant 1.000000e+00 : f32
    %62 = vector.broadcast %cst_30 : f32 to vector<8x32xf32>
    %63 = arith.subf %62, %53 : vector<8x32xf32>
    %64 = arith.mulf %63, %60 : vector<8x32xf32>
    %65 = arith.addf %61, %64 : vector<8x32xf32>
    %c0_31 = arith.constant 0 : index
    %c0_32 = arith.constant 0 : index
    %c0_33 = arith.constant 0 : index
    %66 = vector.load %arg9[%c0_31, %c0_32, %c0_33] : memref<1x8x32xf32, #tpu.memory_space<vmem>>, vector<1x8x32xf32>
    %67 = vector.shape_cast %66 : vector<1x8x32xf32> to vector<8x32xf32>
    %68 = vector.shape_cast %65 : vector<8x32xf32> to vector<1x8x32xf32>
    tpu.vector_store %arg9[%c0_31, %c0_32, %c0_33], %68 {strides = array<i32>} : memref<1x8x32xf32, #tpu.memory_space<vmem>>, vector<1x8x32xf32>,
    return
  }
  func.func @transform_0(%arg0: i32, %arg1: i32) -> (i32, i32, i32) {
    %c0_i32 = arith.constant 0 : i32
    %c0_i32_0 = arith.constant 0 : i32
    return %arg0, %arg1, %c0_i32 : i32, i32, i32
  }
  func.func @transform_1(%arg0: i32, %arg1: i32) -> (i32, i32, i32) {
    %c0_i32 = arith.constant 0 : i32
    %c0_i32_0 = arith.constant 0 : i32
    %c0_i32_1 = arith.constant 0 : i32
    return %arg0, %c0_i32, %c0_i32_0 : i32, i32, i32
  }
  func.func @transform_2(%arg0: i32, %arg1: i32) -> (i32, i32, i32) {
    %c0_i32 = arith.constant 0 : i32
    %c0_i32_0 = arith.constant 0 : i32
    return %arg0, %arg1, %c0_i32 : i32, i32, i32
  }
  func.func @transform_3(%arg0: i32, %arg1: i32) -> (i32, i32) {
    %c0_i32 = arith.constant 0 : i32
    %c0_i32_0 = arith.constant 0 : i32
    %c0_i32_1 = arith.constant 0 : i32
    return %c0_i32, %c0_i32_0 : i32, i32
  }
  func.func @transform_4(%arg0: i32, %arg1: i32) -> (i32, i32) {
    %c0_i32 = arith.constant 0 : i32
    %c0_i32_0 = arith.constant 0 : i32
    %c0_i32_1 = arith.constant 0 : i32
    return %c0_i32, %c0_i32_0 : i32, i32
  }
  func.func @transform_5(%arg0: i32, %arg1: i32) -> (i32, i32) {
    %c0_i32 = arith.constant 0 : i32
    %c0_i32_0 = arith.constant 0 : i32
    %c0_i32_1 = arith.constant 0 : i32
    return %c0_i32, %c0_i32_0 : i32, i32
  }
  func.func @transform_6(%arg0: i32, %arg1: i32) -> (i32, i32) {
    %c0_i32 = arith.constant 0 : i32
    %c0_i32_0 = arith.constant 0 : i32
    %c0_i32_1 = arith.constant 0 : i32
    return %c0_i32, %c0_i32_0 : i32, i32
  }
  func.func @transform_7(%arg0: i32, %arg1: i32) -> (i32, i32, i32) {
    %c0_i32 = arith.constant 0 : i32
    %c0_i32_0 = arith.constant 0 : i32
    return %arg0, %arg1, %c0_i32 : i32, i32, i32
  }
}

</mosaic_0001>

<llo_original>
// kernel: tpu_custom_call.1
$region0: #{tpu_custom_call.1}
  #allocation0 [shape = 'u32[]', space=smem, size = 0x4, offset = 0x4, fixed_abs, tag = 'smem constant byte address 0x4 - core index']
  #allocation1 [shape = 'u32[144,128]{1,0:T(1,128)}', space=vmem, size = 0x12000, scoped, tag = 'internal scratch']
  %s0 = inlined_call_operand.vmem [shape: s32[2,16,4], index: 0, kind: input, shape index: {}]
  %s1 = inlined_call_operand.vmem [shape: f32[2,16,4], index: 1, kind: input, shape index: {}]
  %s2 = inlined_call_operand.vmem [shape: f32[2,16,32], index: 2, kind: input, shape index: {}]
  %s3 = inlined_call_operand.hbm [shape: f32[4,96], index: 3, kind: input, shape index: {}]
  %s4 = inlined_call_operand.vmem [shape: f32[1,96], index: 4, kind: input, shape index: {}]
  %s5 = inlined_call_operand.vmem [shape: f32[32,64], index: 5, kind: input, shape index: {}]
  %s6 = inlined_call_operand.vmem [shape: f32[32,32], index: 6, kind: input, shape index: {}]
  %s7 = inlined_call_operand.hbm [shape: f32[2,16,32], index: 7, kind: output, shape index: {}]
  %s8 = sld [smem:[#allocation0]]
  $region65: #{tpu_custom_call.1} parent=0
    _
  %s10 = ssub.s32 1, %s8
  %s11 = scalar_select 0, %s10, %s8
  $region1: #{tpu_custom_call.1} parent=0
    #allocation2 [shape = 'u8[2048]{0}', space=vmem, size = 0x800, scoped, tag = 'input window, operand 3, single buffered']
    #allocation3 [shape = 's32[2]{0}', space=sflag, size = 0x8, scoped, tag = 'scoped memory for tpu_custom_call.1']
    #allocation4 [shape = 's32[2]{0}', space=sflag, size = 0x8, scoped, tag = 'scoped memory for tpu_custom_call.1']
    #allocation5 [shape = 'u8[8192]{0}', space=vmem, size = 0x2000, scoped, tag = 'output window, operand 0']
    %12 = vsyncpa [#allocation3], 0
    %13 = vsyncpa [#allocation4], 0
    %s14 = scalar_lea.sflag [#allocation4], 1
    %15 = vsyncpa %s14, 0
    loop: start=0, step=1, limit=6
    $region2: #{tpu_custom_call.1} parent=1 // loop_pre_header
      _
    $region3: #{tpu_custom_call.1} parent=1 // loop_header
      %s17 = sphi 0, %s21
      %p18 = scmp.ge.s32.totalorder %s17, 6
      %s24 = sphi 0, %s36
      %s25 = sphi 0, %s32
      %s26 = sphi 0, %s24
      %s27 = sphi 0, %s25
      %s28 = sphi 0, %s26
      %s29 = sphi 0, %s27
      %s41 = sphi 0, %s43
      %s44 = sphi 0, %s41
      %s45 = sphi 0, %s44
      %s61 = sphi 0, %s45
      %s67 = sphi 0, %s69
      %s70 = sphi 0, %s67
      %s71 = sphi 0, %s70
      %s87 = sphi 0, %s71
      %s95 = sphi 0, %s97
      %s98 = sphi 0, %s95
      %s99 = sphi 0, %s98
      %s115 = sphi 0, %s99
      %s119 = sphi 0, %s119
      %s121 = sphi 0, %s119
      %s122 = sphi 0, %s121
      %s136 = sphi 0, %s122
      %s140 = sphi 0, %s140
      %s142 = sphi 0, %s140
      %s143 = sphi 0, %s142
      %s157 = sphi 0, %s143
      %s161 = sphi 0, %s161
      %s163 = sphi 0, %s161
      %s164 = sphi 0, %s163
      %s178 = sphi 0, %s164
      %s182 = sphi 0, %s182
      %s184 = sphi 0, %s182
      %s185 = sphi 0, %s184
      %s199 = sphi 0, %s185
      %s207 = sphi 0, %s209
      %s210 = sphi 0, %s207
      %s211 = sphi 0, %s210
      %s227 = sphi 0, %s211
    $region4: #{tpu_custom_call.1} parent=1 // loop_header_branch
      %20 = sbr.rel (%p18) target = $region8
    $region5: #{tpu_custom_call.1} parent=1 // loop_body
      %s22 = ssub.s32 %s17, 1
      %s23 = ssub.s32 %s17, 2
      %s30 = sadd.s32 1, %s25
      %p31 = scmp.ge.s32.totalorder %s30, 2
      %s32 = scalar_select %p31, 0, %s30
      %s33 = sadd.s32 1, %s24
      %s34 = scalar_select %p31, %s33, %s24
      %p35 = scmp.ge.s32.totalorder %s34, 2
      %s36 = scalar_select %p35, 0, %s34
      %s37 = ssub.s32 %s24, %s36
      %s38 = ssub.s32 %s25, %s32
      %s39 = sor.u32 %s37, %s38
      %p40 = scmp.eq.s32.totalorder %s39, 0
      %s42 = sadd.s32 %s41, 1
      %s43 = scalar_select %p40, %s41, %s42
      %p46 = pneg %p40
      %p47 = scmp.eq.s32.totalorder %s17, 3
      %p48 = por %p46, %p47
      %p49 = scmp.ne.s32.totalorder %s41, %s44
      %p50 = scmp.eq.s32.totalorder %s17, 0
      %p51 = por %p49, %p50
      %p52 = scmp.ne.s32.totalorder %s41, %s44
      %p53 = scmp.eq.s32.totalorder %s22, 3
      %p54 = por %p52, %p53
      %p55 = scmp.ne.s32.totalorder %s44, %s45
      %p56 = scmp.eq.s32.totalorder %s22, 0
      %p57 = por %p55, %p56
      %p58 = scmp.ne.s32.totalorder %s44, %s45
      %p59 = scmp.eq.s32.totalorder %s23, 3
      %p60 = por %p58, %p59
      %p62 = scmp.ne.s32.totalorder %s45, %s61
      %p63 = scmp.eq.s32.totalorder %s23, 0
      %p64 = por %p62, %p63
      %s65 = ssub.s32 %s24, %s36
      %p66 = scmp.eq.s32.totalorder %s65, 0
      %s68 = sadd.s32 %s67, 1
      %s69 = scalar_select %p66, %s67, %s68
      %p72 = pneg %p66
      %p73 = scmp.eq.s32.totalorder %s17, 3
      %p74 = por %p72, %p73
      %p75 = scmp.ne.s32.totalorder %s67, %s70
      %p76 = scmp.eq.s32.totalorder %s17, 0
      %p77 = por %p75, %p76
      %p78 = scmp.ne.s32.totalorder %s67, %s70
      %p79 = scmp.eq.s32.totalorder %s22, 3
      %p80 = por %p78, %p79
      %p81 = scmp.ne.s32.totalorder %s70, %s71
      %p82 = scmp.eq.s32.totalorder %s22, 0
      %p83 = por %p81, %p82
      %p84 = scmp.ne.s32.totalorder %s70, %s71
      %p85 = scmp.eq.s32.totalorder %s23, 3
      %p86 = por %p84, %p85
      %p88 = scmp.ne.s32.totalorder %s71, %s87
      %p89 = scmp.eq.s32.totalorder %s23, 0
      %p90 = por %p88, %p89
      %s91 = ssub.s32 %s24, %s36
      %s92 = ssub.s32 %s25, %s32
      %s93 = sor.u32 %s91, %s92
      %p94 = scmp.eq.s32.totalorder %s93, 0
      %s96 = sadd.s32 %s95, 1
      %s97 = scalar_select %p94, %s95, %s96
      %p100 = pneg %p94
      %p101 = scmp.eq.s32.totalorder %s17, 3
      %p102 = por %p100, %p101
      %p103 = scmp.ne.s32.totalorder %s95, %s98
      %p104 = scmp.eq.s32.totalorder %s17, 0
      %p105 = por %p103, %p104
      %p106 = scmp.ne.s32.totalorder %s95, %s98
      %p107 = scmp.eq.s32.totalorder %s22, 3
      %p108 = por %p106, %p107
      %p109 = scmp.ne.s32.totalorder %s98, %s99
      %p110 = scmp.eq.s32.totalorder %s22, 0
      %p111 = por %p109, %p110
      %p112 = scmp.ne.s32.totalorder %s98, %s99
      %p113 = scmp.eq.s32.totalorder %s23, 3
      %p114 = por %p112, %p113
      %p116 = scmp.ne.s32.totalorder %s99, %s115
      %p117 = scmp.eq.s32.totalorder %s23, 0
      %p118 = por %p116, %p117
      %s120 = sadd.s32 %s119, 1
      %p123 = scmp.eq.s32.totalorder %s17, 3
      %p124 = scmp.ne.s32.totalorder %s119, %s121
      %p125 = scmp.eq.s32.totalorder %s17, 0
      %p126 = por %p124, %p125
      %p127 = scmp.ne.s32.totalorder %s119, %s121
      %p128 = scmp.eq.s32.totalorder %s22, 3
      %p129 = por %p127, %p128
      %p130 = scmp.ne.s32.totalorder %s121, %s122
      %p131 = scmp.eq.s32.totalorder %s22, 0
      %p132 = por %p130, %p131
      %p133 = scmp.ne.s32.totalorder %s121, %s122
      %p134 = scmp.eq.s32.totalorder %s23, 3
      %p135 = por %p133, %p134
      %p137 = scmp.ne.s32.totalorder %s122, %s136
      %p138 = scmp.eq.s32.totalorder %s23, 0
      %p139 = por %p137, %p138
      %s141 = sadd.s32 %s140, 1
      %p144 = scmp.eq.s32.totalorder %s17, 3
      %p145 = scmp.ne.s32.totalorder %s140, %s142
      %p146 = scmp.eq.s32.totalorder %s17, 0
      %p147 = por %p145, %p146
      %p148 = scmp.ne.s32.totalorder %s140, %s142
      %p149 = scmp.eq.s32.totalorder %s22, 3
      %p150 = por %p148, %p149
      %p151 = scmp.ne.s32.totalorder %s142, %s143
      %p152 = scmp.eq.s32.totalorder %s22, 0
      %p153 = por %p151, %p152
      %p154 = scmp.ne.s32.totalorder %s142, %s143
      %p155 = scmp.eq.s32.totalorder %s23, 3
      %p156 = por %p154, %p155
      %p158 = scmp.ne.s32.totalorder %s143, %s157
      %p159 = scmp.eq.s32.totalorder %s23, 0
      %p160 = por %p158, %p159
      %s162 = sadd.s32 %s161, 1
      %p165 = scmp.eq.s32.totalorder %s17, 3
      %p166 = scmp.ne.s32.totalorder %s161, %s163
      %p167 = scmp.eq.s32.totalorder %s17, 0
      %p168 = por %p166, %p167
      %p169 = scmp.ne.s32.totalorder %s161, %s163
      %p170 = scmp.eq.s32.totalorder %s22, 3
      %p171 = por %p169, %p170
      %p172 = scmp.ne.s32.totalorder %s163, %s164
      %p173 = scmp.eq.s32.totalorder %s22, 0
      %p174 = por %p172, %p173
      %p175 = scmp.ne.s32.totalorder %s163, %s164
      %p176 = scmp.eq.s32.totalorder %s23, 3
      %p177 = por %p175, %p176
      %p179 = scmp.ne.s32.totalorder %s164, %s178
      %p180 = scmp.eq.s32.totalorder %s23, 0
      %p181 = por %p179, %p180
      %s183 = sadd.s32 %s182, 1
      %p186 = scmp.eq.s32.totalorder %s17, 3
      %p187 = scmp.ne.s32.totalorder %s182, %s184
      %p188 = scmp.eq.s32.totalorder %s17, 0
      %p189 = por %p187, %p188
      %p190 = scmp.ne.s32.totalorder %s182, %s184
      %p191 = scmp.eq.s32.totalorder %s22, 3
      %p192 = por %p190, %p191
      %p193 = scmp.ne.s32.totalorder %s184, %s185
      %p194 = scmp.eq.s32.totalorder %s22, 0
      %p195 = por %p193, %p194
      %p196 = scmp.ne.s32.totalorder %s184, %s185
      %p197 = scmp.eq.s32.totalorder %s23, 3
      %p198 = por %p196, %p197
      %p200 = scmp.ne.s32.totalorder %s185, %s199
      %p201 = scmp.eq.s32.totalorder %s23, 0
      %p202 = por %p200, %p201
      %s203 = ssub.s32 %s24, %s36
      %s204 = ssub.s32 %s25, %s32
      %s205 = sor.u32 %s203, %s204
      %p206 = scmp.eq.s32.totalorder %s205, 0
      %s208 = sadd.s32 %s207, 1
      %s209 = scalar_select %p206, %s207, %s208
      %p212 = pneg %p206
      %p213 = scmp.eq.s32.totalorder %s17, 3
      %p214 = por %p212, %p213
      %p215 = scmp.ne.s32.totalorder %s207, %s210
      %p216 = scmp.eq.s32.totalorder %s17, 0
      %p217 = por %p215, %p216
      %p218 = scmp.ne.s32.totalorder %s207, %s210
      %p219 = scmp.eq.s32.totalorder %s22, 3
      %p220 = por %p218, %p219
      %p221 = scmp.ne.s32.totalorder %s210, %s211
      %p222 = scmp.eq.s32.totalorder %s22, 0
      %p223 = por %p221, %p222
      %p224 = scmp.ne.s32.totalorder %s210, %s211
      %p225 = scmp.eq.s32.totalorder %s23, 3
      %p226 = por %p224, %p225
      %p228 = scmp.ne.s32.totalorder %s211, %s227
      %p229 = scmp.eq.s32.totalorder %s23, 0
      %p230 = por %p228, %p229
      %p231 = scmp.le.s32.totalorder 1, %s17
      %p232 = scmp.lt.s32.totalorder %s17, 5
      %p233 = pnand %p231, %p232
      %p234 = pneg %p233
      // Predicated region
      $region9: #{tpu_custom_call.1} parent=5 // pred_check
        _
      $region10: #{tpu_custom_call.1} parent=5 // pred_check_branch
        %236 = sbr.rel (%p233) target = $region12
      $region11: #{tpu_custom_call.1} parent=5 // pred_region
        %s237 = ssub.s32 %s17, 1
        // Predicated region
        $region13: #{tpu_custom_call.1} parent=11 // pred_check
          %p238 = pneg %p132
        $region14: #{tpu_custom_call.1} parent=11 // pred_check_branch
          %240 = sbr.rel (%p238) target = $region16
        $region15: #{tpu_custom_call.1} parent=11 // pred_region
          %s242 = ssub.s32 64, 64
          %243 = vsyncadd [#allocation3], %s242
          %s245 = sshll.u32 [#allocation2], 4
          %s246 = int_to_ptr.vmem [resolvable:$true] %s245
          %248 = dma.hbm_to_vmem [thread:$0]  %s3, 64, %s246, [#allocation3]
        $region16: #{tpu_custom_call.1} parent=11 // pred_fallthru
          _
        // Predicated region
        $region17: #{tpu_custom_call.1} parent=11 // pred_check
          %p249 = pneg %p153
        $region18: #{tpu_custom_call.1} parent=11 // pred_check_branch
          %251 = sbr.rel (%p249) target = $region20
        $region19: #{tpu_custom_call.1} parent=11 // pred_region
          _
        $region20: #{tpu_custom_call.1} parent=11 // pred_fallthru
          _
        // Predicated region
        $region21: #{tpu_custom_call.1} parent=11 // pred_check
          %p252 = pneg %p174
        $region22: #{tpu_custom_call.1} parent=11 // pred_check_branch
          %254 = sbr.rel (%p252) target = $region24
        $region23: #{tpu_custom_call.1} parent=11 // pred_region
          _
        $region24: #{tpu_custom_call.1} parent=11 // pred_fallthru
          _
        // Predicated region
        $region25: #{tpu_custom_call.1} parent=11 // pred_check
          %p255 = pneg %p195
        $region26: #{tpu_custom_call.1} parent=11 // pred_check_branch
          %257 = sbr.rel (%p255) target = $region28
        $region27: #{tpu_custom_call.1} parent=11 // pred_region
          _
        $region28: #{tpu_custom_call.1} parent=11 // pred_fallthru
          _
      $region12: #{tpu_custom_call.1} parent=5 // pred_fallthru
        _
      %p258 = scmp.lt.s32.totalorder %s17, 4
      // Predicated region
      $region29: #{tpu_custom_call.1} parent=5 // pred_check
        %p259 = pneg %p258
      $region30: #{tpu_custom_call.1} parent=5 // pred_check_branch
        %261 = sbr.rel (%p259) target = $region32
      $region31: #{tpu_custom_call.1} parent=5 // pred_region
        // Predicated region
        $region33: #{tpu_custom_call.1} parent=31 // pred_check
          %p262 = pneg %p51
        $region34: #{tpu_custom_call.1} parent=31 // pred_check_branch
          %264 = sbr.rel (%p262) target = $region36
        $region35: #{tpu_custom_call.1} parent=31 // pred_region
          %p265 = scmp.lt.s32.totalorder %s24, 1
          %s266 = scalar_select %p265, %s24, 1
          %p267 = scmp.lt.s32.totalorder %s25, 1
          %s268 = scalar_select %p267, %s25, 1
          %s269 = smul.addr %s266, 2
          %s270 = sadd.s32 %s268, %s269
          %s271 = smul.addr %s270, 8
          %s272 = scalar_lea.vmem %s0, %s271
        $region36: #{tpu_custom_call.1} parent=31 // pred_fallthru
          _
        // Predicated region
        $region37: #{tpu_custom_call.1} parent=31 // pred_check
          %p273 = pneg %p77
        $region38: #{tpu_custom_call.1} parent=31 // pred_check_branch
          %275 = sbr.rel (%p273) target = $region40
        $region39: #{tpu_custom_call.1} parent=31 // pred_region
          %p276 = scmp.lt.s32.totalorder %s24, 1
          %s277 = scalar_select %p276, %s24, 1
          %s278 = smul.addr %s277, 2
          %s279 = smul.addr %s278, 8
          %s280 = scalar_lea.vmem %s1, %s279
        $region40: #{tpu_custom_call.1} parent=31 // pred_fallthru
          _
        // Predicated region
        $region41: #{tpu_custom_call.1} parent=31 // pred_check
          %p281 = pneg %p105
        $region42: #{tpu_custom_call.1} parent=31 // pred_check_branch
          %283 = sbr.rel (%p281) target = $region44
        $region43: #{tpu_custom_call.1} parent=31 // pred_region
          %p284 = scmp.lt.s32.totalorder %s24, 1
          %s285 = scalar_select %p284, %s24, 1
          %p286 = scmp.lt.s32.totalorder %s25, 1
          %s287 = scalar_select %p286, %s25, 1
          %s288 = smul.addr %s285, 2
          %s289 = sadd.s32 %s287, %s288
          %s290 = smul.addr %s289, 8
          %s291 = scalar_lea.vmem %s2, %s290
        $region44: #{tpu_custom_call.1} parent=31 // pred_fallthru
          _
      $region32: #{tpu_custom_call.1} parent=5 // pred_fallthru
        _
      %p292 = scmp.le.s32.totalorder 1, %s17
      %p293 = scmp.lt.s32.totalorder %s17, 5
      %p294 = pnand %p292, %p293
      %p295 = pneg %p294
      // Predicated region
      $region45: #{tpu_custom_call.1} parent=5 // pred_check
        _
      $region46: #{tpu_custom_call.1} parent=5 // pred_check_branch
        %297 = sbr.rel (%p294) target = $region48
      $region47: #{tpu_custom_call.1} parent=5 // pred_region
        %s298 = ssub.s32 %s17, 1
        // Predicated region
        $region49: #{tpu_custom_call.1} parent=47 // pred_check
          %p299 = pneg %p132
        $region50: #{tpu_custom_call.1} parent=47 // pred_check_branch
          %301 = sbr.rel (%p299) target = $region52
        $region51: #{tpu_custom_call.1} parent=47 // pred_region
          %302 = dma.done [#allocation3], 64
        $region52: #{tpu_custom_call.1} parent=47 // pred_fallthru
          _
        %p303 = scmp.lt.s32.totalorder %s26, 1
        %s304 = scalar_select %p303, %s26, 1
        %p305 = scmp.lt.s32.totalorder %s27, 1
        %s306 = scalar_select %p305, %s27, 1
        %s307 = smul.addr %s304, 2
        %s308 = sadd.s32 %s306, %s307
        %s309 = smul.addr %s308, 8
        %s310 = scalar_lea.vmem %s0, %s309
        %p311 = pneg %p57
        %p312 = pneg %p54
        %p313 = scmp.lt.s32.totalorder %s26, 1
        %s314 = scalar_select %p313, %s26, 1
        %s315 = smul.addr %s314, 2
        %s316 = smul.addr %s315, 8
        %s317 = scalar_lea.vmem %s1, %s316
        %p318 = pneg %p83
        %p319 = pneg %p80
        %p320 = scmp.lt.s32.totalorder %s26, 1
        %s321 = scalar_select %p320, %s26, 1
        %p322 = scmp.lt.s32.totalorder %s27, 1
        %s323 = scalar_select %p322, %s27, 1
        %s324 = smul.addr %s321, 2
        %s325 = sadd.s32 %s323, %s324
        %s326 = smul.addr %s325, 8
        %s327 = scalar_lea.vmem %s2, %s326
        %p328 = pneg %p111
        %p329 = pneg %p108
        %p330 = pneg %p132
        %p331 = pneg %p129
        %p332 = pneg %p153
        %p333 = pneg %p150
        %p334 = pneg %p174
        %p335 = pneg %p171
        %p336 = pneg %p195
        %p337 = pneg %p192
        %p338 = pneg %p223
        %p339 = pneg %p220
        %s340 = sand.u32 %s210, 1
        %s341 = scalar_lea.sflag [#allocation4], %s340
        %s342 = sand.u32 %s210, 1
        %s343 = smul.addr %s342, 8
        %s344 = scalar_lea.vmem [#allocation5], %s343
        %p345 = scmp.lt.s32.totalorder %s26, 1
        %s346 = scalar_select %p345, %s26, 1
        %p347 = scmp.lt.s32.totalorder %s27, 1
        %s348 = scalar_select %p347, %s27, 1
        %s349 = smul.addr %s346, 2
        %s350 = sadd.s32 %s348, %s349
        %s351 = smul.addr %s350, 8
        %s352 = scalar_lea.vmem %s0, %s351
        %p353 = scmp.lt.s32.totalorder %s26, 1
        %s354 = scalar_select %p353, %s26, 1
        %s355 = smul.addr %s354, 2
        %s356 = smul.addr %s355, 8
        %s357 = scalar_lea.vmem %s1, %s356
        %p358 = scmp.lt.s32.totalorder %s26, 1
        %s359 = scalar_select %p358, %s26, 1
        %p360 = scmp.lt.s32.totalorder %s27, 1
        %s361 = scalar_select %p360, %s27, 1
        %s362 = smul.addr %s359, 2
        %s363 = sadd.s32 %s361, %s362
        %s364 = smul.addr %s363, 8
        %s365 = scalar_lea.vmem %s2, %s364
        %v366 = vld [vmem:[%s352] sm:$0xff]
        %v367 = vld [vmem:[%s357] sm:$0xff]
        %v368 = vld [vmem:[%s357 + $0x8] sm:$0xff]
        %v369 = vld [vmem:[%s365] sm:$0xff]
        %v370 = vlaneseq
        %v371 = vand.u32 %v370, 127
        %372 = vset.pattern.permute.xlu0 0
        %373 = vperm.xlu0 %372, %v366
        %v374 = vpop.permute.xlu0 %373
        %vm375 = vcmp.eq.s32.totalorder %v371, %v374
        %v376 = vsel %vm375, 1.0, 0.0
        %v377 = vadd.f32 %v376, 0.0
        %378 = vset.pattern.permute.xlu0 1
        %379 = vperm.xlu0 %378, %v366
        %v380 = vpop.permute.xlu0 %379
        %vm381 = vcmp.eq.s32.totalorder %v371, %v380
        %v382 = vsel %vm381, 1.0, 0.0
        %v383 = vadd.f32 %v377, %v382
        %384 = vset.pattern.permute.xlu0 2
        %385 = vperm.xlu0 %384, %v366
        %v386 = vpop.permute.xlu0 %385
        %vm387 = vcmp.eq.s32.totalorder %v371, %v386
        %v388 = vsel %vm387, 1.0, 0.0
        %v389 = vadd.f32 %v383, %v388
        %390 = vset.pattern.permute.xlu0 3
        %391 = vperm.xlu0 %390, %v366
        %v392 = vpop.permute.xlu0 %391
        %vm393 = vcmp.eq.s32.totalorder %v371, %v392
        %v394 = vsel %vm393, 1.0, 0.0
        %v395 = vadd.f32 %v389, %v394
        %vm396 = vcmask 130048
        %v398 = vsel %vm396, %v395, 0
        %400 = vmatprep.subr.mxu0 0.0
        %v401 = vand.u32 %v367, 4294901760
        %402 = vmatpush1.msra.mxu0 %v401
        %403 = vmatprep.subr.mxu0 0.0
        %v404 = vand.u32 %v368, 4294901760
        %405 = vmatpush1.msra.mxu0 %v404
        %406 = vmatprep.subr.mxu0 0.0
        %407 = vmatpush1.msra.mxu0 0.0
        %408 = vmatprep.subr.mxu0 0.0
        %409 = vmatpush1.msra.mxu0 0.0
        %410 = vmatprep.subr.mxu0 0.0
        %411 = vmatpush1.msra.mxu0 0.0
        %412 = vmatprep.subr.mxu0 0.0
        %413 = vmatpush1.msra.mxu0 0.0
        %414 = vmatprep.subr.mxu0 0.0
        %415 = vmatpush1.msra.mxu0 0.0
        %416 = vmatprep.subr.mxu0 0.0
        %417 = vmatpush1.msra.mxu0 0.0
        %418 = vmatprep.subr.mxu0 0.0
        %419 = vmatpush1.msra.mxu0 0.0
        %420 = vmatprep.subr.mxu0 0.0
        %421 = vmatpush1.msra.mxu0 0.0
        %422 = vmatprep.subr.mxu0 0.0
        %423 = vmatpush1.msra.mxu0 0.0
        %424 = vmatprep.subr.mxu0 0.0
        %425 = vmatpush1.msra.mxu0 0.0
        %426 = vmatprep.subr.mxu0 0.0
        %427 = vmatpush1.msra.mxu0 0.0
        %428 = vmatprep.subr.mxu0 0.0
        %429 = vmatpush1.msra.mxu0 0.0
        %430 = vmatprep.subr.mxu0 0.0
        %431 = vmatpush1.msra.mxu0 0.0
        %432 = vmatprep.subr.mxu0 0.0
        %433 = vmatpush1.msra.mxu0 0.0
        %434 = vmatprep.subr.mxu0 0.0
        %435 = vmatpush1.msra.mxu0 0.0
        %436 = vmatprep.subr.mxu0 0.0
        %437 = vmatpush1.msra.mxu0 0.0
        %438 = vmatprep.subr.mxu0 0.0
        %439 = vmatpush1.msra.mxu0 0.0
        %440 = vmatprep.subr.mxu0 0.0
        %441 = vmatpush1.msra.mxu0 0.0
        %442 = vmatprep.subr.mxu0 0.0
        %443 = vmatpush1.msra.mxu0 0.0
        %444 = vmatprep.subr.mxu0 0.0
        %445 = vmatpush1.msra.mxu0 0.0
        %446 = vmatprep.subr.mxu0 0.0
        %447 = vmatpush1.msra.mxu0 0.0
        %448 = vmatprep.subr.mxu0 0.0
        %449 = vmatpush1.msra.mxu0 0.0
        %450 = vmatprep.subr.mxu0 0.0
        %451 = vmatpush1.msra.mxu0 0.0
        %452 = vmatprep.subr.mxu0 0.0
        %453 = vmatpush1.msra.mxu0 0.0
        %454 = vmatprep.subr.mxu0 0.0
        %455 = vmatpush1.msra.mxu0 0.0
        %456 = vmatprep.subr.mxu0 0.0
        %457 = vmatpush1.msra.mxu0 0.0
        %458 = vmatprep.subr.mxu0 0.0
        %459 = vmatpush1.msra.mxu0 0.0
        %460 = vmatprep.subr.mxu0 0.0
        %461 = vmatpush1.msra.mxu0 0.0
        %462 = vmatprep.subr.mxu0 0.0
        %463 = vmatpush1.msra.mxu0 0.0
        %464 = vmatprep.subr.mxu0 0.0
        %465 = vmatpush1.msra.mxu0 0.0
        %466 = vmatprep.mubr.f32.mxu0 0.0
        %v467 = vand.u32 %v398, 4294901760
        %v468 = vsub.f32 %v398, %v467
        %v469 = vand.u32 %v468, 4294901760
        %v470 = vsub.f32 %v468, %v469
        %v471 = vand.u32 %v470, 4294901760
        %472 = vmatmul.mubr.f32.gmra.mrb[0].mxu0 %v471
        %v473 = vpop.f32.mrb[0].mxu0
        %v474 = vadd.f32 0.0, %v473
        %v475 = vpop.f32.mrb[0].mxu0
        %476 = vdwg.mxu0
        %477 = vmatprep.subr.mxu0 0.0
        %v478 = vand.u32 %v367, 4294901760
        %v479 = vsub.f32 %v367, %v478
        %v480 = vand.u32 %v479, 4294901760
        %v481 = vsub.f32 %v479, %v480
        %v482 = vand.u32 %v481, 4294901760
        %483 = vmatpush1.msra.mxu0 %v482
        %484 = vmatprep.subr.mxu0 0.0
        %v485 = vand.u32 %v368, 4294901760
        %v486 = vsub.f32 %v368, %v485
        %v487 = vand.u32 %v486, 4294901760
        %v488 = vsub.f32 %v486, %v487
        %v489 = vand.u32 %v488, 4294901760
        %490 = vmatpush1.msra.mxu0 %v489
        %491 = vmatprep.subr.mxu0 0.0
        %492 = vmatpush1.msra.mxu0 0.0
        %493 = vmatprep.subr.mxu0 0.0
        %494 = vmatpush1.msra.mxu0 0.0
        %495 = vmatprep.subr.mxu0 0.0
        %496 = vmatpush1.msra.mxu0 0.0
        %497 = vmatprep.subr.mxu0 0.0
        %498 = vmatpush1.msra.mxu0 0.0
        %499 = vmatprep.subr.mxu0 0.0
        %500 = vmatpush1.msra.mxu0 0.0
        %501 = vmatprep.subr.mxu0 0.0
        %502 = vmatpush1.msra.mxu0 0.0
        %503 = vmatprep.subr.mxu0 0.0
        %504 = vmatpush1.msra.mxu0 0.0
        %505 = vmatprep.subr.mxu0 0.0
        %506 = vmatpush1.msra.mxu0 0.0
        %507 = vmatprep.subr.mxu0 0.0
        %508 = vmatpush1.msra.mxu0 0.0
        %509 = vmatprep.subr.mxu0 0.0
        %510 = vmatpush1.msra.mxu0 0.0
        %511 = vmatprep.subr.mxu0 0.0
        %512 = vmatpush1.msra.mxu0 0.0
        %513 = vmatprep.subr.mxu0 0.0
        %514 = vmatpush1.msra.mxu0 0.0
        %515 = vmatprep.subr.mxu0 0.0
        %516 = vmatpush1.msra.mxu0 0.0
        %517 = vmatprep.subr.mxu0 0.0
        %518 = vmatpush1.msra.mxu0 0.0
        %519 = vmatprep.subr.mxu0 0.0
        %520 = vmatpush1.msra.mxu0 0.0
        %521 = vmatprep.subr.mxu0 0.0
        %522 = vmatpush1.msra.mxu0 0.0
        %523 = vmatprep.subr.mxu0 0.0
        %524 = vmatpush1.msra.mxu0 0.0
        %525 = vmatprep.subr.mxu0 0.0
        %526 = vmatpush1.msra.mxu0 0.0
        %527 = vmatprep.subr.mxu0 0.0
        %528 = vmatpush1.msra.mxu0 0.0
        %529 = vmatprep.subr.mxu0 0.0
        %530 = vmatpush1.msra.mxu0 0.0
        %531 = vmatprep.subr.mxu0 0.0
        %532 = vmatpush1.msra.mxu0 0.0
        %533 = vmatprep.subr.mxu0 0.0
        %534 = vmatpush1.msra.mxu0 0.0
        %535 = vmatprep.subr.mxu0 0.0
        %536 = vmatpush1.msra.mxu0 0.0
        %537 = vmatprep.subr.mxu0 0.0
        %538 = vmatpush1.msra.mxu0 0.0
        %539 = vmatprep.subr.mxu0 0.0
        %540 = vmatpush1.msra.mxu0 0.0
        %541 = vmatprep.subr.mxu0 0.0
        %542 = vmatpush1.msra.mxu0 0.0
        %543 = vmatprep.subr.mxu0 0.0
        %544 = vmatpush1.msra.mxu0 0.0
        %545 = vmatprep.subr.mxu0 0.0
        %546 = vmatpush1.msra.mxu0 0.0
        %547 = vmatprep.subr.mxu0 0.0
        %548 = vmatpush1.msra.mxu0 0.0
        %549 = vmatprep.subr.mxu0 0.0
        %550 = vmatpush1.msra.mxu0 0.0
        %551 = vmatprep.mubr.f32.mxu0 0.0
        %v552 = vand.u32 %v398, 4294901760
        %553 = vmatmul.mubr.f32.gmra.mrb[0].mxu0 %v552
        %v554 = vpop.f32.mrb[0].mxu0
        %v555 = vadd.f32 %v474, %v554
        %v556 = vpop.f32.mrb[0].mxu0
        %557 = vdwg.mxu0
        %558 = vmatprep.subr.mxu0 0.0
        %v559 = vand.u32 %v367, 4294901760
        %v560 = vsub.f32 %v367, %v559
        %561 = vmatpush1.msra.mxu0 %v560
        %562 = vmatprep.subr.mxu0 0.0
        %v563 = vand.u32 %v368, 4294901760
        %v564 = vsub.f32 %v368, %v563
        %565 = vmatpush1.msra.mxu0 %v564
        %566 = vmatprep.subr.mxu0 0.0
        %567 = vmatpush1.msra.mxu0 0.0
        %568 = vmatprep.subr.mxu0 0.0
        %569 = vmatpush1.msra.mxu0 0.0
        %570 = vmatprep.subr.mxu0 0.0
        %571 = vmatpush1.msra.mxu0 0.0
        %572 = vmatprep.subr.mxu0 0.0
        %573 = vmatpush1.msra.mxu0 0.0
        %574 = vmatprep.subr.mxu0 0.0
        %575 = vmatpush1.msra.mxu0 0.0
        %576 = vmatprep.subr.mxu0 0.0
        %577 = vmatpush1.msra.mxu0 0.0
        %578 = vmatprep.subr.mxu0 0.0
        %579 = vmatpush1.msra.mxu0 0.0
        %580 = vmatprep.subr.mxu0 0.0
        %581 = vmatpush1.msra.mxu0 0.0
        %582 = vmatprep.subr.mxu0 0.0
        %583 = vmatpush1.msra.mxu0 0.0
        %584 = vmatprep.subr.mxu0 0.0
        %585 = vmatpush1.msra.mxu0 0.0
        %586 = vmatprep.subr.mxu0 0.0
        %587 = vmatpush1.msra.mxu0 0.0
        %588 = vmatprep.subr.mxu0 0.0
        %589 = vmatpush1.msra.mxu0 0.0
        %590 = vmatprep.subr.mxu0 0.0
        %591 = vmatpush1.msra.mxu0 0.0
        %592 = vmatprep.subr.mxu0 0.0
        %593 = vmatpush1.msra.mxu0 0.0
        %594 = vmatprep.subr.mxu0 0.0
        %595 = vmatpush1.msra.mxu0 0.0
        %596 = vmatprep.subr.mxu0 0.0
        %597 = vmatpush1.msra.mxu0 0.0
        %598 = vmatprep.subr.mxu0 0.0
        %599 = vmatpush1.msra.mxu0 0.0
        %600 = vmatprep.subr.mxu0 0.0
        %601 = vmatpush1.msra.mxu0 0.0
        %602 = vmatprep.subr.mxu0 0.0
        %603 = vmatpush1.msra.mxu0 0.0
        %604 = vmatprep.subr.mxu0 0.0
        %605 = vmatpush1.msra.mxu0 0.0
        %606 = vmatprep.subr.mxu0 0.0
        %607 = vmatpush1.msra.mxu0 0.0
        %608 = vmatprep.subr.mxu0 0.0
        %609 = vmatpush1.msra.mxu0 0.0
        %610 = vmatprep.subr.mxu0 0.0
        %611 = vmatpush1.msra.mxu0 0.0
        %612 = vmatprep.subr.mxu0 0.0
        %613 = vmatpush1.msra.mxu0 0.0
        %614 = vmatprep.subr.mxu0 0.0
        %615 = vmatpush1.msra.mxu0 0.0
        %616 = vmatprep.subr.mxu0 0.0
        %617 = vmatpush1.msra.mxu0 0.0
        %618 = vmatprep.subr.mxu0 0.0
        %619 = vmatpush1.msra.mxu0 0.0
        %620 = vmatprep.subr.mxu0 0.0
        %621 = vmatpush1.msra.mxu0 0.0
        %622 = vmatprep.subr.mxu0 0.0
        %623 = vmatpush1.msra.mxu0 0.0
        %624 = vmatprep.subr.mxu0 0.0
        %625 = vmatpush1.msra.mxu0 0.0
        %626 = vmatprep.mubr.f32.mxu0 0.0
        %v627 = vand.u32 %v398, 4294901760
        %v628 = vsub.f32 %v398, %v627
        %629 = vmatmul.mubr.f32.gmra.mrb[0].mxu0 %v628
        %v630 = vpop.f32.mrb[0].mxu0
        %v631 = vadd.f32 %v555, %v630
        %v632 = vpop.f32.mrb[0].mxu0
        %633 = vdwg.mxu0
        %634 = vmatprep.subr.mxu0 0.0
        %v635 = vand.u32 %v367, 4294901760
        %636 = vmatpush1.msra.mxu0 %v635
        %637 = vmatprep.subr.mxu0 0.0
        %v638 = vand.u32 %v368, 4294901760
        %639 = vmatpush1.msra.mxu0 %v638
        %640 = vmatprep.subr.mxu0 0.0
        %641 = vmatpush1.msra.mxu0 0.0
        %642 = vmatprep.subr.mxu0 0.0
        %643 = vmatpush1.msra.mxu0 0.0
        %644 = vmatprep.subr.mxu0 0.0
        %645 = vmatpush1.msra.mxu0 0.0
        %646 = vmatprep.subr.mxu0 0.0
        %647 = vmatpush1.msra.mxu0 0.0
        %648 = vmatprep.subr.mxu0 0.0
        %649 = vmatpush1.msra.mxu0 0.0
        %650 = vmatprep.subr.mxu0 0.0
        %651 = vmatpush1.msra.mxu0 0.0
        %652 = vmatprep.subr.mxu0 0.0
        %653 = vmatpush1.msra.mxu0 0.0
        %654 = vmatprep.subr.mxu0 0.0
        %655 = vmatpush1.msra.mxu0 0.0
        %656 = vmatprep.subr.mxu0 0.0
        %657 = vmatpush1.msra.mxu0 0.0
        %658 = vmatprep.subr.mxu0 0.0
        %659 = vmatpush1.msra.mxu0 0.0
        %660 = vmatprep.subr.mxu0 0.0
        %661 = vmatpush1.msra.mxu0 0.0
        %662 = vmatprep.subr.mxu0 0.0
        %663 = vmatpush1.msra.mxu0 0.0
        %664 = vmatprep.subr.mxu0 0.0
        %665 = vmatpush1.msra.mxu0 0.0
        %666 = vmatprep.subr.mxu0 0.0
        %667 = vmatpush1.msra.mxu0 0.0
        %668 = vmatprep.subr.mxu0 0.0
        %669 = vmatpush1.msra.mxu0 0.0
        %670 = vmatprep.subr.mxu0 0.0
        %671 = vmatpush1.msra.mxu0 0.0
        %672 = vmatprep.subr.mxu0 0.0
        %673 = vmatpush1.msra.mxu0 0.0
        %674 = vmatprep.subr.mxu0 0.0
        %675 = vmatpush1.msra.mxu0 0.0
        %676 = vmatprep.subr.mxu0 0.0
        %677 = vmatpush1.msra.mxu0 0.0
        %678 = vmatprep.subr.mxu0 0.0
        %679 = vmatpush1.msra.mxu0 0.0
        %680 = vmatprep.subr.mxu0 0.0
        %681 = vmatpush1.msra.mxu0 0.0
        %682 = vmatprep.subr.mxu0 0.0
        %683 = vmatpush1.msra.mxu0 0.0
        %684 = vmatprep.subr.mxu0 0.0
        %685 = vmatpush1.msra.mxu0 0.0
        %686 = vmatprep.subr.mxu0 0.0
        %687 = vmatpush1.msra.mxu0 0.0
        %688 = vmatprep.subr.mxu0 0.0
        %689 = vmatpush1.msra.mxu0 0.0
        %690 = vmatprep.subr.mxu0 0.0
        %691 = vmatpush1.msra.mxu0 0.0
        %692 = vmatprep.subr.mxu0 0.0
        %693 = vmatpush1.msra.mxu0 0.0
        %694 = vmatprep.subr.mxu0 0.0
        %695 = vmatpush1.msra.mxu0 0.0
        %696 = vmatprep.subr.mxu0 0.0
        %697 = vmatpush1.msra.mxu0 0.0
        %698 = vmatprep.subr.mxu0 0.0
        %699 = vmatpush1.msra.mxu0 0.0
        %700 = vmatprep.mubr.f32.mxu0 0.0
        %v701 = vand.u32 %v398, 4294901760
        %v702 = vsub.f32 %v398, %v701
        %v703 = vand.u32 %v702, 4294901760
        %704 = vmatmul.mubr.f32.gmra.mrb[0].mxu0 %v703
        %v705 = vpop.f32.mrb[0].mxu0
        %v706 = vadd.f32 %v631, %v705
        %v707 = vpop.f32.mrb[0].mxu0
        %708 = vdwg.mxu0
        %709 = vmatprep.subr.mxu0 0.0
        %v710 = vand.u32 %v367, 4294901760
        %v711 = vsub.f32 %v367, %v710
        %v712 = vand.u32 %v711, 4294901760
        %713 = vmatpush1.msra.mxu0 %v712
        %714 = vmatprep.subr.mxu0 0.0
        %v715 = vand.u32 %v368, 4294901760
        %v716 = vsub.f32 %v368, %v715
        %v717 = vand.u32 %v716, 4294901760
        %718 = vmatpush1.msra.mxu0 %v717
        %719 = vmatprep.subr.mxu0 0.0
        %720 = vmatpush1.msra.mxu0 0.0
        %721 = vmatprep.subr.mxu0 0.0
        %722 = vmatpush1.msra.mxu0 0.0
        %723 = vmatprep.subr.mxu0 0.0
        %724 = vmatpush1.msra.mxu0 0.0
        %725 = vmatprep.subr.mxu0 0.0
        %726 = vmatpush1.msra.mxu0 0.0
        %727 = vmatprep.subr.mxu0 0.0
        %728 = vmatpush1.msra.mxu0 0.0
        %729 = vmatprep.subr.mxu0 0.0
        %730 = vmatpush1.msra.mxu0 0.0
        %731 = vmatprep.subr.mxu0 0.0
        %732 = vmatpush1.msra.mxu0 0.0
        %733 = vmatprep.subr.mxu0 0.0
        %734 = vmatpush1.msra.mxu0 0.0
        %735 = vmatprep.subr.mxu0 0.0
        %736 = vmatpush1.msra.mxu0 0.0
        %737 = vmatprep.subr.mxu0 0.0
        %738 = vmatpush1.msra.mxu0 0.0
        %739 = vmatprep.subr.mxu0 0.0
        %740 = vmatpush1.msra.mxu0 0.0
        %741 = vmatprep.subr.mxu0 0.0
        %742 = vmatpush1.msra.mxu0 0.0
        %743 = vmatprep.subr.mxu0 0.0
        %744 = vmatpush1.msra.mxu0 0.0
        %745 = vmatprep.subr.mxu0 0.0
        %746 = vmatpush1.msra.mxu0 0.0
        %747 = vmatprep.subr.mxu0 0.0
        %748 = vmatpush1.msra.mxu0 0.0
        %749 = vmatprep.subr.mxu0 0.0
        %750 = vmatpush1.msra.mxu0 0.0
        %751 = vmatprep.subr.mxu0 0.0
        %752 = vmatpush1.msra.mxu0 0.0
        %753 = vmatprep.subr.mxu0 0.0
        %754 = vmatpush1.msra.mxu0 0.0
        %755 = vmatprep.subr.mxu0 0.0
        %756 = vmatpush1.msra.mxu0 0.0
        %757 = vmatprep.subr.mxu0 0.0
        %758 = vmatpush1.msra.mxu0 0.0
        %759 = vmatprep.subr.mxu0 0.0
        %760 = vmatpush1.msra.mxu0 0.0
        %761 = vmatprep.subr.mxu0 0.0
        %762 = vmatpush1.msra.mxu0 0.0
        %763 = vmatprep.subr.mxu0 0.0
        %764 = vmatpush1.msra.mxu0 0.0
        %765 = vmatprep.subr.mxu0 0.0
        %766 = vmatpush1.msra.mxu0 0.0
        %767 = vmatprep.subr.mxu0 0.0
        %768 = vmatpush1.msra.mxu0 0.0
        %769 = vmatprep.subr.mxu0 0.0
        %770 = vmatpush1.msra.mxu0 0.0
        %771 = vmatprep.subr.mxu0 0.0
        %772 = vmatpush1.msra.mxu0 0.0
        %773 = vmatprep.subr.mxu0 0.0
        %774 = vmatpush1.msra.mxu0 0.0
        %775 = vmatprep.subr.mxu0 0.0
        %776 = vmatpush1.msra.mxu0 0.0
        %777 = vmatprep.subr.mxu0 0.0
        %778 = vmatpush1.msra.mxu0 0.0
        %779 = vmatprep.mubr.f32.mxu0 0.0
        %v780 = vand.u32 %v398, 4294901760
        %781 = vmatmul.mubr.f32.gmra.mrb[0].mxu0 %v780
        %v782 = vpop.f32.mrb[0].mxu0
        %v783 = vadd.f32 %v706, %v782
        %v784 = vpop.f32.mrb[0].mxu0
        %785 = vdwg.mxu0
        %786 = vmatprep.subr.mxu0 0.0
        %v787 = vand.u32 %v367, 4294901760
        %788 = vmatpush1.msra.mxu0 %v787
        %789 = vmatprep.subr.mxu0 0.0
        %v790 = vand.u32 %v368, 4294901760
        %791 = vmatpush1.msra.mxu0 %v790
        %792 = vmatprep.subr.mxu0 0.0
        %793 = vmatpush1.msra.mxu0 0.0
        %794 = vmatprep.subr.mxu0 0.0
        %795 = vmatpush1.msra.mxu0 0.0
        %796 = vmatprep.subr.mxu0 0.0
        %797 = vmatpush1.msra.mxu0 0.0
        %798 = vmatprep.subr.mxu0 0.0
        %799 = vmatpush1.msra.mxu0 0.0
        %800 = vmatprep.subr.mxu0 0.0
        %801 = vmatpush1.msra.mxu0 0.0
        %802 = vmatprep.subr.mxu0 0.0
        %803 = vmatpush1.msra.mxu0 0.0
        %804 = vmatprep.subr.mxu0 0.0
        %805 = vmatpush1.msra.mxu0 0.0
        %806 = vmatprep.subr.mxu0 0.0
        %807 = vmatpush1.msra.mxu0 0.0
        %808 = vmatprep.subr.mxu0 0.0
        %809 = vmatpush1.msra.mxu0 0.0
        %810 = vmatprep.subr.mxu0 0.0
        %811 = vmatpush1.msra.mxu0 0.0
        %812 = vmatprep.subr.mxu0 0.0
        %813 = vmatpush1.msra.mxu0 0.0
        %814 = vmatprep.subr.mxu0 0.0
        %815 = vmatpush1.msra.mxu0 0.0
        %816 = vmatprep.subr.mxu0 0.0
        %817 = vmatpush1.msra.mxu0 0.0
        %818 = vmatprep.subr.mxu0 0.0
        %819 = vmatpush1.msra.mxu0 0.0
        %820 = vmatprep.subr.mxu0 0.0
        %821 = vmatpush1.msra.mxu0 0.0
        %822 = vmatprep.subr.mxu0 0.0
        %823 = vmatpush1.msra.mxu0 0.0
        %824 = vmatprep.subr.mxu0 0.0
        %825 = vmatpush1.msra.mxu0 0.0
        %826 = vmatprep.subr.mxu0 0.0
        %827 = vmatpush1.msra.mxu0 0.0
        %828 = vmatprep.subr.mxu0 0.0
        %829 = vmatpush1.msra.mxu0 0.0
        %830 = vmatprep.subr.mxu0 0.0
        %831 = vmatpush1.msra.mxu0 0.0
        %832 = vmatprep.subr.mxu0 0.0
        %833 = vmatpush1.msra.mxu0 0.0
        %834 = vmatprep.subr.mxu0 0.0
        %835 = vmatpush1.msra.mxu0 0.0
        %836 = vmatprep.subr.mxu0 0.0
        %837 = vmatpush1.msra.mxu0 0.0
        %838 = vmatprep.subr.mxu0 0.0
        %839 = vmatpush1.msra.mxu0 0.0
        %840 = vmatprep.subr.mxu0 0.0
        %841 = vmatpush1.msra.mxu0 0.0
        %842 = vmatprep.subr.mxu0 0.0
        %843 = vmatpush1.msra.mxu0 0.0
        %844 = vmatprep.subr.mxu0 0.0
        %845 = vmatpush1.msra.mxu0 0.0
        %846 = vmatprep.subr.mxu0 0.0
        %847 = vmatpush1.msra.mxu0 0.0
        %848 = vmatprep.subr.mxu0 0.0
        %849 = vmatpush1.msra.mxu0 0.0
        %850 = vmatprep.subr.mxu0 0.0
        %851 = vmatpush1.msra.mxu0 0.0
        %852 = vmatprep.mubr.f32.mxu0 0.0
        %v853 = vand.u32 %v398, 4294901760
        %854 = vmatmul.mubr.f32.gmra.mrb[0].mxu0 %v853
        %v855 = vpop.f32.mrb[0].mxu0
        %v856 = vadd.f32 %v783, %v855
        %v857 = vpop.f32.mrb[0].mxu0
        %858 = vdwg.mxu0
        %v859 = vmul.f32 %v856, 0.25
        %v860 = vld [vmem:[#allocation2] sm:$0xf]
        %v861 = vld [vmem:[%s4] sm:$0x1]
        %v863 = vlaneseq
        %v864 = vshrl.u32 %v863, 7
        %v865 = vsub.s32 0, %v864
        %v866 = vrot.slane %v861, %v865
        %vm868 = vcmask 31744
        %v870 = vsel %vm868, %v859, 0
        %vm872 = vcmask 1043456
        %v874 = vsel %vm872, %v860, 0
        %876 = vmatprep.subr.mxu0 0.0
        %v877 = vand.u32 %v874, 4294901760
        %878 = vmatpush1.msra.mxu0 %v877
        %879 = vmatprep.subr.mxu0 0.0
        %880 = vmatpush1.msra.mxu0 0.0
        %881 = vmatprep.subr.mxu0 0.0
        %882 = vmatpush1.msra.mxu0 0.0
        %883 = vmatprep.subr.mxu0 0.0
        %884 = vmatpush1.msra.mxu0 0.0
        %885 = vmatprep.subr.mxu0 0.0
        %886 = vmatpush1.msra.mxu0 0.0
        %887 = vmatprep.subr.mxu0 0.0
        %888 = vmatpush1.msra.mxu0 0.0
        %889 = vmatprep.subr.mxu0 0.0
        %890 = vmatpush1.msra.mxu0 0.0
        %891 = vmatprep.subr.mxu0 0.0
        %892 = vmatpush1.msra.mxu0 0.0
        %893 = vmatprep.subr.mxu0 0.0
        %894 = vmatpush1.msra.mxu0 0.0
        %895 = vmatprep.subr.mxu0 0.0
        %896 = vmatpush1.msra.mxu0 0.0
        %897 = vmatprep.subr.mxu0 0.0
        %898 = vmatpush1.msra.mxu0 0.0
        %899 = vmatprep.subr.mxu0 0.0
        %900 = vmatpush1.msra.mxu0 0.0
        %901 = vmatprep.subr.mxu0 0.0
        %902 = vmatpush1.msra.mxu0 0.0
        %903 = vmatprep.subr.mxu0 0.0
        %904 = vmatpush1.msra.mxu0 0.0
        %905 = vmatprep.subr.mxu0 0.0
        %906 = vmatpush1.msra.mxu0 0.0
        %907 = vmatprep.subr.mxu0 0.0
        %908 = vmatpush1.msra.mxu0 0.0
        %909 = vmatprep.subr.mxu0 0.0
        %910 = vmatpush1.msra.mxu0 0.0
        %911 = vmatprep.subr.mxu0 0.0
        %912 = vmatpush1.msra.mxu0 0.0
        %913 = vmatprep.subr.mxu0 0.0
        %914 = vmatpush1.msra.mxu0 0.0
        %915 = vmatprep.subr.mxu0 0.0
        %916 = vmatpush1.msra.mxu0 0.0
        %917 = vmatprep.subr.mxu0 0.0
        %918 = vmatpush1.msra.mxu0 0.0
        %919 = vmatprep.subr.mxu0 0.0
        %920 = vmatpush1.msra.mxu0 0.0
        %921 = vmatprep.subr.mxu0 0.0
        %922 = vmatpush1.msra.mxu0 0.0
        %923 = vmatprep.subr.mxu0 0.0
        %924 = vmatpush1.msra.mxu0 0.0
        %925 = vmatprep.subr.mxu0 0.0
        %926 = vmatpush1.msra.mxu0 0.0
        %927 = vmatprep.subr.mxu0 0.0
        %928 = vmatpush1.msra.mxu0 0.0
        %929 = vmatprep.subr.mxu0 0.0
        %930 = vmatpush1.msra.mxu0 0.0
        %931 = vmatprep.subr.mxu0 0.0
        %932 = vmatpush1.msra.mxu0 0.0
        %933 = vmatprep.subr.mxu0 0.0
        %934 = vmatpush1.msra.mxu0 0.0
        %935 = vmatprep.subr.mxu0 0.0
        %936 = vmatpush1.msra.mxu0 0.0
        %937 = vmatprep.subr.mxu0 0.0
        %938 = vmatpush1.msra.mxu0 0.0
        %939 = vmatprep.subr.mxu0 0.0
        %940 = vmatpush1.msra.mxu0 0.0
        %941 = vmatprep.mubr.f32.mxu0 0.0
        %v942 = vand.u32 %v870, 4294901760
        %v943 = vsub.f32 %v870, %v942
        %v944 = vand.u32 %v943, 4294901760
        %v945 = vsub.f32 %v943, %v944
        %v946 = vand.u32 %v945, 4294901760
        %947 = vmatmul.mubr.f32.gmra.mrb[0].mxu0 %v946
        %v948 = vpop.f32.mrb[0].mxu0
        %v949 = vadd.f32 %v866, %v948
        %v950 = vpop.f32.mrb[0].mxu0
        %951 = vdwg.mxu0
        %952 = vmatprep.subr.mxu0 0.0
        %v953 = vand.u32 %v874, 4294901760
        %v954 = vsub.f32 %v874, %v953
        %v955 = vand.u32 %v954, 4294901760
        %v956 = vsub.f32 %v954, %v955
        %v957 = vand.u32 %v956, 4294901760
        %958 = vmatpush1.msra.mxu0 %v957
        %959 = vmatprep.subr.mxu0 0.0
        %960 = vmatpush1.msra.mxu0 0.0
        %961 = vmatprep.subr.mxu0 0.0
        %962 = vmatpush1.msra.mxu0 0.0
        %963 = vmatprep.subr.mxu0 0.0
        %964 = vmatpush1.msra.mxu0 0.0
        %965 = vmatprep.subr.mxu0 0.0
        %966 = vmatpush1.msra.mxu0 0.0
        %967 = vmatprep.subr.mxu0 0.0
        %968 = vmatpush1.msra.mxu0 0.0
        %969 = vmatprep.subr.mxu0 0.0
        %970 = vmatpush1.msra.mxu0 0.0
        %971 = vmatprep.subr.mxu0 0.0
        %972 = vmatpush1.msra.mxu0 0.0
        %973 = vmatprep.subr.mxu0 0.0
        %974 = vmatpush1.msra.mxu0 0.0
        %975 = vmatprep.subr.mxu0 0.0
        %976 = vmatpush1.msra.mxu0 0.0
        %977 = vmatprep.subr.mxu0 0.0
        %978 = vmatpush1.msra.mxu0 0.0
        %979 = vmatprep.subr.mxu0 0.0
        %980 = vmatpush1.msra.mxu0 0.0
        %981 = vmatprep.subr.mxu0 0.0
        %982 = vmatpush1.msra.mxu0 0.0
        %983 = vmatprep.subr.mxu0 0.0
        %984 = vmatpush1.msra.mxu0 0.0
        %985 = vmatprep.subr.mxu0 0.0
        %986 = vmatpush1.msra.mxu0 0.0
        %987 = vmatprep.subr.mxu0 0.0
        %988 = vmatpush1.msra.mxu0 0.0
        %989 = vmatprep.subr.mxu0 0.0
        %990 = vmatpush1.msra.mxu0 0.0
        %991 = vmatprep.subr.mxu0 0.0
        %992 = vmatpush1.msra.mxu0 0.0
        %993 = vmatprep.subr.mxu0 0.0
        %994 = vmatpush1.msra.mxu0 0.0
        %995 = vmatprep.subr.mxu0 0.0
        %996 = vmatpush1.msra.mxu0 0.0
        %997 = vmatprep.subr.mxu0 0.0
        %998 = vmatpush1.msra.mxu0 0.0
        %999 = vmatprep.subr.mxu0 0.0
        %1000 = vmatpush1.msra.mxu0 0.0
        %1001 = vmatprep.subr.mxu0 0.0
        %1002 = vmatpush1.msra.mxu0 0.0
        %1003 = vmatprep.subr.mxu0 0.0
        %1004 = vmatpush1.msra.mxu0 0.0
        %1005 = vmatprep.subr.mxu0 0.0
        %1006 = vmatpush1.msra.mxu0 0.0
        %1007 = vmatprep.subr.mxu0 0.0
        %1008 = vmatpush1.msra.mxu0 0.0
        %1009 = vmatprep.subr.mxu0 0.0
        %1010 = vmatpush1.msra.mxu0 0.0
        %1011 = vmatprep.subr.mxu0 0.0
        %1012 = vmatpush1.msra.mxu0 0.0
        %1013 = vmatprep.subr.mxu0 0.0
        %1014 = vmatpush1.msra.mxu0 0.0
        %1015 = vmatprep.subr.mxu0 0.0
        %1016 = vmatpush1.msra.mxu0 0.0
        %1017 = vmatprep.subr.mxu0 0.0
        %1018 = vmatpush1.msra.mxu0 0.0
        %1019 = vmatprep.subr.mxu0 0.0
        %1020 = vmatpush1.msra.mxu0 0.0
        %1021 = vmatprep.mubr.f32.mxu0 0.0
        %v1022 = vand.u32 %v870, 4294901760
        %1023 = vmatmul.mubr.f32.gmra.mrb[0].mxu0 %v1022
        %v1024 = vpop.f32.mrb[0].mxu0
        %v1025 = vadd.f32 %v949, %v1024
        %v1026 = vpop.f32.mrb[0].mxu0
        %1027 = vdwg.mxu0
        %1028 = vmatprep.subr.mxu0 0.0
        %v1029 = vand.u32 %v874, 4294901760
        %v1030 = vsub.f32 %v874, %v1029
        %1031 = vmatpush1.msra.mxu0 %v1030
        %1032 = vmatprep.subr.mxu0 0.0
        %1033 = vmatpush1.msra.mxu0 0.0
        %1034 = vmatprep.subr.mxu0 0.0
        %1035 = vmatpush1.msra.mxu0 0.0
        %1036 = vmatprep.subr.mxu0 0.0
        %1037 = vmatpush1.msra.mxu0 0.0
        %1038 = vmatprep.subr.mxu0 0.0
        %1039 = vmatpush1.msra.mxu0 0.0
        %1040 = vmatprep.subr.mxu0 0.0
        %1041 = vmatpush1.msra.mxu0 0.0
        %1042 = vmatprep.subr.mxu0 0.0
        %1043 = vmatpush1.msra.mxu0 0.0
        %1044 = vmatprep.subr.mxu0 0.0
        %1045 = vmatpush1.msra.mxu0 0.0
        %1046 = vmatprep.subr.mxu0 0.0
        %1047 = vmatpush1.msra.mxu0 0.0
        %1048 = vmatprep.subr.mxu0 0.0
        %1049 = vmatpush1.msra.mxu0 0.0
        %1050 = vmatprep.subr.mxu0 0.0
        %1051 = vmatpush1.msra.mxu0 0.0
        %1052 = vmatprep.subr.mxu0 0.0
        %1053 = vmatpush1.msra.mxu0 0.0
        %1054 = vmatprep.subr.mxu0 0.0
        %1055 = vmatpush1.msra.mxu0 0.0
        %1056 = vmatprep.subr.mxu0 0.0
        %1057 = vmatpush1.msra.mxu0 0.0
        %1058 = vmatprep.subr.mxu0 0.0
        %1059 = vmatpush1.msra.mxu0 0.0
        %1060 = vmatprep.subr.mxu0 0.0
        %1061 = vmatpush1.msra.mxu0 0.0
        %1062 = vmatprep.subr.mxu0 0.0
        %1063 = vmatpush1.msra.mxu0 0.0
        %1064 = vmatprep.subr.mxu0 0.0
        %1065 = vmatpush1.msra.mxu0 0.0
        %1066 = vmatprep.subr.mxu0 0.0
        %1067 = vmatpush1.msra.mxu0 0.0
        %1068 = vmatprep.subr.mxu0 0.0
        %1069 = vmatpush1.msra.mxu0 0.0
        %1070 = vmatprep.subr.mxu0 0.0
        %1071 = vmatpush1.msra.mxu0 0.0
        %1072 = vmatprep.subr.mxu0 0.0
        %1073 = vmatpush1.msra.mxu0 0.0
        %1074 = vmatprep.subr.mxu0 0.0
        %1075 = vmatpush1.msra.mxu0 0.0
        %1076 = vmatprep.subr.mxu0 0.0
        %1077 = vmatpush1.msra.mxu0 0.0
        %1078 = vmatprep.subr.mxu0 0.0
        %1079 = vmatpush1.msra.mxu0 0.0
        %1080 = vmatprep.subr.mxu0 0.0
        %1081 = vmatpush1.msra.mxu0 0.0
        %1082 = vmatprep.subr.mxu0 0.0
        %1083 = vmatpush1.msra.mxu0 0.0
        %1084 = vmatprep.subr.mxu0 0.0
        %1085 = vmatpush1.msra.mxu0 0.0
        %1086 = vmatprep.subr.mxu0 0.0
        %1087 = vmatpush1.msra.mxu0 0.0
        %1088 = vmatprep.subr.mxu0 0.0
        %1089 = vmatpush1.msra.mxu0 0.0
        %1090 = vmatprep.subr.mxu0 0.0
        %1091 = vmatpush1.msra.mxu0 0.0
        %1092 = vmatprep.subr.mxu0 0.0
        %1093 = vmatpush1.msra.mxu0 0.0
        %1094 = vmatprep.mubr.f32.mxu0 0.0
        %v1095 = vand.u32 %v870, 4294901760
        %v1096 = vsub.f32 %v870, %v1095
        %1097 = vmatmul.mubr.f32.gmra.mrb[0].mxu0 %v1096
        %v1098 = vpop.f32.mrb[0].mxu0
        %v1099 = vadd.f32 %v1025, %v1098
        %v1100 = vpop.f32.mrb[0].mxu0
        %1101 = vdwg.mxu0
        %1102 = vmatprep.subr.mxu0 0.0
        %v1103 = vand.u32 %v874, 4294901760
        %1104 = vmatpush1.msra.mxu0 %v1103
        %1105 = vmatprep.subr.mxu0 0.0
        %1106 = vmatpush1.msra.mxu0 0.0
        %1107 = vmatprep.subr.mxu0 0.0
        %1108 = vmatpush1.msra.mxu0 0.0
        %1109 = vmatprep.subr.mxu0 0.0
        %1110 = vmatpush1.msra.mxu0 0.0
        %1111 = vmatprep.subr.mxu0 0.0
        %1112 = vmatpush1.msra.mxu0 0.0
        %1113 = vmatprep.subr.mxu0 0.0
        %1114 = vmatpush1.msra.mxu0 0.0
        %1115 = vmatprep.subr.mxu0 0.0
        %1116 = vmatpush1.msra.mxu0 0.0
        %1117 = vmatprep.subr.mxu0 0.0
        %1118 = vmatpush1.msra.mxu0 0.0
        %1119 = vmatprep.subr.mxu0 0.0
        %1120 = vmatpush1.msra.mxu0 0.0
        %1121 = vmatprep.subr.mxu0 0.0
        %1122 = vmatpush1.msra.mxu0 0.0
        %1123 = vmatprep.subr.mxu0 0.0
        %1124 = vmatpush1.msra.mxu0 0.0
        %1125 = vmatprep.subr.mxu0 0.0
        %1126 = vmatpush1.msra.mxu0 0.0
        %1127 = vmatprep.subr.mxu0 0.0
        %1128 = vmatpush1.msra.mxu0 0.0
        %1129 = vmatprep.subr.mxu0 0.0
        %1130 = vmatpush1.msra.mxu0 0.0
        %1131 = vmatprep.subr.mxu0 0.0
        %1132 = vmatpush1.msra.mxu0 0.0
        %1133 = vmatprep.subr.mxu0 0.0
        %1134 = vmatpush1.msra.mxu0 0.0
        %1135 = vmatprep.subr.mxu0 0.0
        %1136 = vmatpush1.msra.mxu0 0.0
        %1137 = vmatprep.subr.mxu0 0.0
        %1138 = vmatpush1.msra.mxu0 0.0
        %1139 = vmatprep.subr.mxu0 0.0
        %1140 = vmatpush1.msra.mxu0 0.0
        %1141 = vmatprep.subr.mxu0 0.0
        %1142 = vmatpush1.msra.mxu0 0.0
        %1143 = vmatprep.subr.mxu0 0.0
        %1144 = vmatpush1.msra.mxu0 0.0
        %1145 = vmatprep.subr.mxu0 0.0
        %1146 = vmatpush1.msra.mxu0 0.0
        %1147 = vmatprep.subr.mxu0 0.0
        %1148 = vmatpush1.msra.mxu0 0.0
        %1149 = vmatprep.subr.mxu0 0.0
        %1150 = vmatpush1.msra.mxu0 0.0
        %1151 = vmatprep.subr.mxu0 0.0
        %1152 = vmatpush1.msra.mxu0 0.0
        %1153 = vmatprep.subr.mxu0 0.0
        %1154 = vmatpush1.msra.mxu0 0.0
        %1155 = vmatprep.subr.mxu0 0.0
        %1156 = vmatpush1.msra.mxu0 0.0
        %1157 = vmatprep.subr.mxu0 0.0
        %1158 = vmatpush1.msra.mxu0 0.0
        %1159 = vmatprep.subr.mxu0 0.0
        %1160 = vmatpush1.msra.mxu0 0.0
        %1161 = vmatprep.subr.mxu0 0.0
        %1162 = vmatpush1.msra.mxu0 0.0
        %1163 = vmatprep.subr.mxu0 0.0
        %1164 = vmatpush1.msra.mxu0 0.0
        %1165 = vmatprep.subr.mxu0 0.0
        %1166 = vmatpush1.msra.mxu0 0.0
        %1167 = vmatprep.mubr.f32.mxu0 0.0
        %v1168 = vand.u32 %v870, 4294901760
        %v1169 = vsub.f32 %v870, %v1168
        %v1170 = vand.u32 %v1169, 4294901760
        %1171 = vmatmul.mubr.f32.gmra.mrb[0].mxu0 %v1170
        %v1172 = vpop.f32.mrb[0].mxu0
        %v1173 = vadd.f32 %v1099, %v1172
        %v1174 = vpop.f32.mrb[0].mxu0
        %1175 = vdwg.mxu0
        %1176 = vmatprep.subr.mxu0 0.0
        %v1177 = vand.u32 %v874, 4294901760
        %v1178 = vsub.f32 %v874, %v1177
        %v1179 = vand.u32 %v1178, 4294901760
        %1180 = vmatpush1.msra.mxu0 %v1179
        %1181 = vmatprep.subr.mxu0 0.0
        %1182 = vmatpush1.msra.mxu0 0.0
        %1183 = vmatprep.subr.mxu0 0.0
        %1184 = vmatpush1.msra.mxu0 0.0
        %1185 = vmatprep.subr.mxu0 0.0
        %1186 = vmatpush1.msra.mxu0 0.0
        %1187 = vmatprep.subr.mxu0 0.0
        %1188 = vmatpush1.msra.mxu0 0.0
        %1189 = vmatprep.subr.mxu0 0.0
        %1190 = vmatpush1.msra.mxu0 0.0
        %1191 = vmatprep.subr.mxu0 0.0
        %1192 = vmatpush1.msra.mxu0 0.0
        %1193 = vmatprep.subr.mxu0 0.0
        %1194 = vmatpush1.msra.mxu0 0.0
        %1195 = vmatprep.subr.mxu0 0.0
        %1196 = vmatpush1.msra.mxu0 0.0
        %1197 = vmatprep.subr.mxu0 0.0
        %1198 = vmatpush1.msra.mxu0 0.0
        %1199 = vmatprep.subr.mxu0 0.0
        %1200 = vmatpush1.msra.mxu0 0.0
        %1201 = vmatprep.subr.mxu0 0.0
        %1202 = vmatpush1.msra.mxu0 0.0
        %1203 = vmatprep.subr.mxu0 0.0
        %1204 = vmatpush1.msra.mxu0 0.0
        %1205 = vmatprep.subr.mxu0 0.0
        %1206 = vmatpush1.msra.mxu0 0.0
        %1207 = vmatprep.subr.mxu0 0.0
        %1208 = vmatpush1.msra.mxu0 0.0
        %1209 = vmatprep.subr.mxu0 0.0
        %1210 = vmatpush1.msra.mxu0 0.0
        %1211 = vmatprep.subr.mxu0 0.0
        %1212 = vmatpush1.msra.mxu0 0.0
        %1213 = vmatprep.subr.mxu0 0.0
        %1214 = vmatpush1.msra.mxu0 0.0
        %1215 = vmatprep.subr.mxu0 0.0
        %1216 = vmatpush1.msra.mxu0 0.0
        %1217 = vmatprep.subr.mxu0 0.0
        %1218 = vmatpush1.msra.mxu0 0.0
        %1219 = vmatprep.subr.mxu0 0.0
        %1220 = vmatpush1.msra.mxu0 0.0
        %1221 = vmatprep.subr.mxu0 0.0
        %1222 = vmatpush1.msra.mxu0 0.0
        %1223 = vmatprep.subr.mxu0 0.0
        %1224 = vmatpush1.msra.mxu0 0.0
        %1225 = vmatprep.subr.mxu0 0.0
        %1226 = vmatpush1.msra.mxu0 0.0
        %1227 = vmatprep.subr.mxu0 0.0
        %1228 = vmatpush1.msra.mxu0 0.0
        %1229 = vmatprep.subr.mxu0 0.0
        %1230 = vmatpush1.msra.mxu0 0.0
        %1231 = vmatprep.subr.mxu0 0.0
        %1232 = vmatpush1.msra.mxu0 0.0
        %1233 = vmatprep.subr.mxu0 0.0
        %1234 = vmatpush1.msra.mxu0 0.0
        %1235 = vmatprep.subr.mxu0 0.0
        %1236 = vmatpush1.msra.mxu0 0.0
        %1237 = vmatprep.subr.mxu0 0.0
        %1238 = vmatpush1.msra.mxu0 0.0
        %1239 = vmatprep.subr.mxu0 0.0
        %1240 = vmatpush1.msra.mxu0 0.0
        %1241 = vmatprep.subr.mxu0 0.0
        %1242 = vmatpush1.msra.mxu0 0.0
        %1243 = vmatprep.mubr.f32.mxu0 0.0
        %v1244 = vand.u32 %v870, 4294901760
        %1245 = vmatmul.mubr.f32.gmra.mrb[0].mxu0 %v1244
        %v1246 = vpop.f32.mrb[0].mxu0
        %v1247 = vadd.f32 %v1173, %v1246
        %v1248 = vpop.f32.mrb[0].mxu0
        %1249 = vdwg.mxu0
        %1250 = vmatprep.subr.mxu0 0.0
        %v1251 = vand.u32 %v874, 4294901760
        %1252 = vmatpush1.msra.mxu0 %v1251
        %1253 = vmatprep.subr.mxu0 0.0
        %1254 = vmatpush1.msra.mxu0 0.0
        %1255 = vmatprep.subr.mxu0 0.0
        %1256 = vmatpush1.msra.mxu0 0.0
        %1257 = vmatprep.subr.mxu0 0.0
        %1258 = vmatpush1.msra.mxu0 0.0
        %1259 = vmatprep.subr.mxu0 0.0
        %1260 = vmatpush1.msra.mxu0 0.0
        %1261 = vmatprep.subr.mxu0 0.0
        %1262 = vmatpush1.msra.mxu0 0.0
        %1263 = vmatprep.subr.mxu0 0.0
        %1264 = vmatpush1.msra.mxu0 0.0
        %1265 = vmatprep.subr.mxu0 0.0
        %1266 = vmatpush1.msra.mxu0 0.0
        %1267 = vmatprep.subr.mxu0 0.0
        %1268 = vmatpush1.msra.mxu0 0.0
        %1269 = vmatprep.subr.mxu0 0.0
        %1270 = vmatpush1.msra.mxu0 0.0
        %1271 = vmatprep.subr.mxu0 0.0
        %1272 = vmatpush1.msra.mxu0 0.0
        %1273 = vmatprep.subr.mxu0 0.0
        %1274 = vmatpush1.msra.mxu0 0.0
        %1275 = vmatprep.subr.mxu0 0.0
        %1276 = vmatpush1.msra.mxu0 0.0
        %1277 = vmatprep.subr.mxu0 0.0
        %1278 = vmatpush1.msra.mxu0 0.0
        %1279 = vmatprep.subr.mxu0 0.0
        %1280 = vmatpush1.msra.mxu0 0.0
        %1281 = vmatprep.subr.mxu0 0.0
        %1282 = vmatpush1.msra.mxu0 0.0
        %1283 = vmatprep.subr.mxu0 0.0
        %1284 = vmatpush1.msra.mxu0 0.0
        %1285 = vmatprep.subr.mxu0 0.0
        %1286 = vmatpush1.msra.mxu0 0.0
        %1287 = vmatprep.subr.mxu0 0.0
        %1288 = vmatpush1.msra.mxu0 0.0
        %1289 = vmatprep.subr.mxu0 0.0
        %1290 = vmatpush1.msra.mxu0 0.0
        %1291 = vmatprep.subr.mxu0 0.0
        %1292 = vmatpush1.msra.mxu0 0.0
        %1293 = vmatprep.subr.mxu0 0.0
        %1294 = vmatpush1.msra.mxu0 0.0
        %1295 = vmatprep.subr.mxu0 0.0
        %1296 = vmatpush1.msra.mxu0 0.0
        %1297 = vmatprep.subr.mxu0 0.0
        %1298 = vmatpush1.msra.mxu0 0.0
        %1299 = vmatprep.subr.mxu0 0.0
        %1300 = vmatpush1.msra.mxu0 0.0
        %1301 = vmatprep.subr.mxu0 0.0
        %1302 = vmatpush1.msra.mxu0 0.0
        %1303 = vmatprep.subr.mxu0 0.0
        %1304 = vmatpush1.msra.mxu0 0.0
        %1305 = vmatprep.subr.mxu0 0.0
        %1306 = vmatpush1.msra.mxu0 0.0
        %1307 = vmatprep.subr.mxu0 0.0
        %1308 = vmatpush1.msra.mxu0 0.0
        %1309 = vmatprep.subr.mxu0 0.0
        %1310 = vmatpush1.msra.mxu0 0.0
        %1311 = vmatprep.subr.mxu0 0.0
        %1312 = vmatpush1.msra.mxu0 0.0
        %1313 = vmatprep.subr.mxu0 0.0
        %1314 = vmatpush1.msra.mxu0 0.0
        %1315 = vmatprep.mubr.f32.mxu0 0.0
        %v1316 = vand.u32 %v870, 4294901760
        %1317 = vmatmul.mubr.f32.gmra.mrb[0].mxu0 %v1316
        %v1318 = vpop.f32.mrb[0].mxu0
        %v1319 = vadd.f32 %v1247, %v1318
        %v1320 = vpop.f32.mrb[0].mxu0
        %1321 = vdwg.mxu0
        %v1322 = vld [vmem:[%s5] sm:$0xff]
        %v1323 = vld [vmem:[%s5 + $0x8] sm:$0xff]
        %v1324 = vld [vmem:[%s5 + $0x10] sm:$0xff]
        %v1325 = vld [vmem:[%s5 + $0x18] sm:$0xff]
        %vm1326 = vcmask 261120
        %v1328 = vsel %vm1326, %v369, 0
        %1330 = vmatprep.subr.mxu0 0.0
        %v1331 = vand.u32 %v1322, 4294901760
        %1332 = vmatpush1.msra.mxu0 %v1331
        %1333 = vmatprep.subr.mxu0 0.0
        %v1334 = vand.u32 %v1323, 4294901760
        %1335 = vmatpush1.msra.mxu0 %v1334
        %1336 = vmatprep.subr.mxu0 0.0
        %v1337 = vand.u32 %v1324, 4294901760
        %1338 = vmatpush1.msra.mxu0 %v1337
        %1339 = vmatprep.subr.mxu0 0.0
        %v1340 = vand.u32 %v1325, 4294901760
        %1341 = vmatpush1.msra.mxu0 %v1340
        %1342 = vmatprep.subr.mxu0 0.0
        %1343 = vmatpush1.msra.mxu0 0.0
        %1344 = vmatprep.subr.mxu0 0.0
        %1345 = vmatpush1.msra.mxu0 0.0
        %1346 = vmatprep.subr.mxu0 0.0
        %1347 = vmatpush1.msra.mxu0 0.0
        %1348 = vmatprep.subr.mxu0 0.0
        %1349 = vmatpush1.msra.mxu0 0.0
        %1350 = vmatprep.subr.mxu0 0.0
        %1351 = vmatpush1.msra.mxu0 0.0
        %1352 = vmatprep.subr.mxu0 0.0
        %1353 = vmatpush1.msra.mxu0 0.0
        %1354 = vmatprep.subr.mxu0 0.0
        %1355 = vmatpush1.msra.mxu0 0.0
        %1356 = vmatprep.subr.mxu0 0.0
        %1357 = vmatpush1.msra.mxu0 0.0
        %1358 = vmatprep.subr.mxu0 0.0
        %1359 = vmatpush1.msra.mxu0 0.0
        %1360 = vmatprep.subr.mxu0 0.0
        %1361 = vmatpush1.msra.mxu0 0.0
        %1362 = vmatprep.subr.mxu0 0.0
        %1363 = vmatpush1.msra.mxu0 0.0
        %1364 = vmatprep.subr.mxu0 0.0
        %1365 = vmatpush1.msra.mxu0 0.0
        %1366 = vmatprep.subr.mxu0 0.0
        %1367 = vmatpush1.msra.mxu0 0.0
        %1368 = vmatprep.subr.mxu0 0.0
        %1369 = vmatpush1.msra.mxu0 0.0
        %1370 = vmatprep.subr.mxu0 0.0
        %1371 = vmatpush1.msra.mxu0 0.0
        %1372 = vmatprep.subr.mxu0 0.0
        %1373 = vmatpush1.msra.mxu0 0.0
        %1374 = vmatprep.subr.mxu0 0.0
        %1375 = vmatpush1.msra.mxu0 0.0
        %1376 = vmatprep.subr.mxu0 0.0
        %1377 = vmatpush1.msra.mxu0 0.0
        %1378 = vmatprep.subr.mxu0 0.0
        %1379 = vmatpush1.msra.mxu0 0.0
        %1380 = vmatprep.subr.mxu0 0.0
        %1381 = vmatpush1.msra.mxu0 0.0
        %1382 = vmatprep.subr.mxu0 0.0
        %1383 = vmatpush1.msra.mxu0 0.0
        %1384 = vmatprep.subr.mxu0 0.0
        %1385 = vmatpush1.msra.mxu0 0.0
        %1386 = vmatprep.subr.mxu0 0.0
        %1387 = vmatpush1.msra.mxu0 0.0
        %1388 = vmatprep.subr.mxu0 0.0
        %1389 = vmatpush1.msra.mxu0 0.0
        %1390 = vmatprep.subr.mxu0 0.0
        %1391 = vmatpush1.msra.mxu0 0.0
        %1392 = vmatprep.subr.mxu0 0.0
        %1393 = vmatpush1.msra.mxu0 0.0
        %1394 = vmatprep.subr.mxu0 0.0
        %1395 = vmatpush1.msra.mxu0 0.0
        %1396 = vmatprep.subr.mxu0 0.0
        %1397 = vmatpush1.msra.mxu0 0.0
        %1398 = vmatprep.mubr.f32.mxu0 0.0
        %v1399 = vand.u32 %v1328, 4294901760
        %v1400 = vsub.f32 %v1328, %v1399
        %v1401 = vand.u32 %v1400, 4294901760
        %v1402 = vsub.f32 %v1400, %v1401
        %v1403 = vand.u32 %v1402, 4294901760
        %1404 = vmatmul.mubr.f32.gmra.mrb[0].mxu0 %v1403
        %v1405 = vpop.f32.mrb[0].mxu0
        %v1406 = vadd.f32 0.0, %v1405
        %v1407 = vpop.f32.mrb[0].mxu0
        %1408 = vdwg.mxu0
        %1409 = vmatprep.subr.mxu0 0.0
        %v1410 = vand.u32 %v1322, 4294901760
        %v1411 = vsub.f32 %v1322, %v1410
        %v1412 = vand.u32 %v1411, 4294901760
        %v1413 = vsub.f32 %v1411, %v1412
        %v1414 = vand.u32 %v1413, 4294901760
        %1415 = vmatpush1.msra.mxu0 %v1414
        %1416 = vmatprep.subr.mxu0 0.0
        %v1417 = vand.u32 %v1323, 4294901760
        %v1418 = vsub.f32 %v1323, %v1417
        %v1419 = vand.u32 %v1418, 4294901760
        %v1420 = vsub.f32 %v1418, %v1419
        %v1421 = vand.u32 %v1420, 4294901760
        %1422 = vmatpush1.msra.mxu0 %v1421
        %1423 = vmatprep.subr.mxu0 0.0
        %v1424 = vand.u32 %v1324, 4294901760
        %v1425 = vsub.f32 %v1324, %v1424
        %v1426 = vand.u32 %v1425, 4294901760
        %v1427 = vsub.f32 %v1425, %v1426
        %v1428 = vand.u32 %v1427, 4294901760
        %1429 = vmatpush1.msra.mxu0 %v1428
        %1430 = vmatprep.subr.mxu0 0.0
        %v1431 = vand.u32 %v1325, 4294901760
        %v1432 = vsub.f32 %v1325, %v1431
        %v1433 = vand.u32 %v1432, 4294901760
        %v1434 = vsub.f32 %v1432, %v1433
        %v1435 = vand.u32 %v1434, 4294901760
        %1436 = vmatpush1.msra.mxu0 %v1435
        %1437 = vmatprep.subr.mxu0 0.0
        %1438 = vmatpush1.msra.mxu0 0.0
        %1439 = vmatprep.subr.mxu0 0.0
        %1440 = vmatpush1.msra.mxu0 0.0
        %1441 = vmatprep.subr.mxu0 0.0
        %1442 = vmatpush1.msra.mxu0 0.0
        %1443 = vmatprep.subr.mxu0 0.0
        %1444 = vmatpush1.msra.mxu0 0.0
        %1445 = vmatprep.subr.mxu0 0.0
        %1446 = vmatpush1.msra.mxu0 0.0
        %1447 = vmatprep.subr.mxu0 0.0
        %1448 = vmatpush1.msra.mxu0 0.0
        %1449 = vmatprep.subr.mxu0 0.0
        %1450 = vmatpush1.msra.mxu0 0.0
        %1451 = vmatprep.subr.mxu0 0.0
        %1452 = vmatpush1.msra.mxu0 0.0
        %1453 = vmatprep.subr.mxu0 0.0
        %1454 = vmatpush1.msra.mxu0 0.0
        %1455 = vmatprep.subr.mxu0 0.0
        %1456 = vmatpush1.msra.mxu0 0.0
        %1457 = vmatprep.subr.mxu0 0.0
        %1458 = vmatpush1.msra.mxu0 0.0
        %1459 = vmatprep.subr.mxu0 0.0
        %1460 = vmatpush1.msra.mxu0 0.0
        %1461 = vmatprep.subr.mxu0 0.0
        %1462 = vmatpush1.msra.mxu0 0.0
        %1463 = vmatprep.subr.mxu0 0.0
        %1464 = vmatpush1.msra.mxu0 0.0
        %1465 = vmatprep.subr.mxu0 0.0
        %1466 = vmatpush1.msra.mxu0 0.0
        %1467 = vmatprep.subr.mxu0 0.0
        %1468 = vmatpush1.msra.mxu0 0.0
        %1469 = vmatprep.subr.mxu0 0.0
        %1470 = vmatpush1.msra.mxu0 0.0
        %1471 = vmatprep.subr.mxu0 0.0
        %1472 = vmatpush1.msra.mxu0 0.0
        %1473 = vmatprep.subr.mxu0 0.0
        %1474 = vmatpush1.msra.mxu0 0.0
        %1475 = vmatprep.subr.mxu0 0.0
        %1476 = vmatpush1.msra.mxu0 0.0
        %1477 = vmatprep.subr.mxu0 0.0
        %1478 = vmatpush1.msra.mxu0 0.0
        %1479 = vmatprep.subr.mxu0 0.0
        %1480 = vmatpush1.msra.mxu0 0.0
        %1481 = vmatprep.subr.mxu0 0.0
        %1482 = vmatpush1.msra.mxu0 0.0
        %1483 = vmatprep.subr.mxu0 0.0
        %1484 = vmatpush1.msra.mxu0 0.0
        %1485 = vmatprep.subr.mxu0 0.0
        %1486 = vmatpush1.msra.mxu0 0.0
        %1487 = vmatprep.subr.mxu0 0.0
        %1488 = vmatpush1.msra.mxu0 0.0
        %1489 = vmatprep.subr.mxu0 0.0
        %1490 = vmatpush1.msra.mxu0 0.0
        %1491 = vmatprep.subr.mxu0 0.0
        %1492 = vmatpush1.msra.mxu0 0.0
        %1493 = vmatprep.mubr.f32.mxu0 0.0
        %v1494 = vand.u32 %v1328, 4294901760
        %1495 = vmatmul.mubr.f32.gmra.mrb[0].mxu0 %v1494
        %v1496 = vpop.f32.mrb[0].mxu0
        %v1497 = vadd.f32 %v1406, %v1496
        %v1498 = vpop.f32.mrb[0].mxu0
        %1499 = vdwg.mxu0
        %1500 = vmatprep.subr.mxu0 0.0
        %v1501 = vand.u32 %v1322, 4294901760
        %v1502 = vsub.f32 %v1322, %v1501
        %1503 = vmatpush1.msra.mxu0 %v1502
        %1504 = vmatprep.subr.mxu0 0.0
        %v1505 = vand.u32 %v1323, 4294901760
        %v1506 = vsub.f32 %v1323, %v1505
        %1507 = vmatpush1.msra.mxu0 %v1506
        %1508 = vmatprep.subr.mxu0 0.0
        %v1509 = vand.u32 %v1324, 4294901760
        %v1510 = vsub.f32 %v1324, %v1509
        %1511 = vmatpush1.msra.mxu0 %v1510
        %1512 = vmatprep.subr.mxu0 0.0
        %v1513 = vand.u32 %v1325, 4294901760
        %v1514 = vsub.f32 %v1325, %v1513
        %1515 = vmatpush1.msra.mxu0 %v1514
        %1516 = vmatprep.subr.mxu0 0.0
        %1517 = vmatpush1.msra.mxu0 0.0
        %1518 = vmatprep.subr.mxu0 0.0
        %1519 = vmatpush1.msra.mxu0 0.0
        %1520 = vmatprep.subr.mxu0 0.0
        %1521 = vmatpush1.msra.mxu0 0.0
        %1522 = vmatprep.subr.mxu0 0.0
        %1523 = vmatpush1.msra.mxu0 0.0
        %1524 = vmatprep.subr.mxu0 0.0
        %1525 = vmatpush1.msra.mxu0 0.0
        %1526 = vmatprep.subr.mxu0 0.0
        %1527 = vmatpush1.msra.mxu0 0.0
        %1528 = vmatprep.subr.mxu0 0.0
        %1529 = vmatpush1.msra.mxu0 0.0
        %1530 = vmatprep.subr.mxu0 0.0
        %1531 = vmatpush1.msra.mxu0 0.0
        %1532 = vmatprep.subr.mxu0 0.0
        %1533 = vmatpush1.msra.mxu0 0.0
        %1534 = vmatprep.subr.mxu0 0.0
        %1535 = vmatpush1.msra.mxu0 0.0
        %1536 = vmatprep.subr.mxu0 0.0
        %1537 = vmatpush1.msra.mxu0 0.0
        %1538 = vmatprep.subr.mxu0 0.0
        %1539 = vmatpush1.msra.mxu0 0.0
        %1540 = vmatprep.subr.mxu0 0.0
        %1541 = vmatpush1.msra.mxu0 0.0
        %1542 = vmatprep.subr.mxu0 0.0
        %1543 = vmatpush1.msra.mxu0 0.0
        %1544 = vmatprep.subr.mxu0 0.0
        %1545 = vmatpush1.msra.mxu0 0.0
        %1546 = vmatprep.subr.mxu0 0.0
        %1547 = vmatpush1.msra.mxu0 0.0
        %1548 = vmatprep.subr.mxu0 0.0
        %1549 = vmatpush1.msra.mxu0 0.0
        %1550 = vmatprep.subr.mxu0 0.0
        %1551 = vmatpush1.msra.mxu0 0.0
        %1552 = vmatprep.subr.mxu0 0.0
        %1553 = vmatpush1.msra.mxu0 0.0
        %1554 = vmatprep.subr.mxu0 0.0
        %1555 = vmatpush1.msra.mxu0 0.0
        %1556 = vmatprep.subr.mxu0 0.0
        %1557 = vmatpush1.msra.mxu0 0.0
        %1558 = vmatprep.subr.mxu0 0.0
        %1559 = vmatpush1.msra.mxu0 0.0
        %1560 = vmatprep.subr.mxu0 0.0
        %1561 = vmatpush1.msra.mxu0 0.0
        %1562 = vmatprep.subr.mxu0 0.0
        %1563 = vmatpush1.msra.mxu0 0.0
        %1564 = vmatprep.subr.mxu0 0.0
        %1565 = vmatpush1.msra.mxu0 0.0
        %1566 = vmatprep.subr.mxu0 0.0
        %1567 = vmatpush1.msra.mxu0 0.0
        %1568 = vmatprep.subr.mxu0 0.0
        %1569 = vmatpush1.msra.mxu0 0.0
        %1570 = vmatprep.subr.mxu0 0.0
        %1571 = vmatpush1.msra.mxu0 0.0
        %1572 = vmatprep.mubr.f32.mxu0 0.0
        %v1573 = vand.u32 %v1328, 4294901760
        %v1574 = vsub.f32 %v1328, %v1573
        %1575 = vmatmul.mubr.f32.gmra.mrb[0].mxu0 %v1574
        %v1576 = vpop.f32.mrb[0].mxu0
        %v1577 = vadd.f32 %v1497, %v1576
        %v1578 = vpop.f32.mrb[0].mxu0
        %1579 = vdwg.mxu0
        %1580 = vmatprep.subr.mxu0 0.0
        %v1581 = vand.u32 %v1322, 4294901760
        %1582 = vmatpush1.msra.mxu0 %v1581
        %1583 = vmatprep.subr.mxu0 0.0
        %v1584 = vand.u32 %v1323, 4294901760
        %1585 = vmatpush1.msra.mxu0 %v1584
        %1586 = vmatprep.subr.mxu0 0.0
        %v1587 = vand.u32 %v1324, 4294901760
        %1588 = vmatpush1.msra.mxu0 %v1587
        %1589 = vmatprep.subr.mxu0 0.0
        %v1590 = vand.u32 %v1325, 4294901760
        %1591 = vmatpush1.msra.mxu0 %v1590
        %1592 = vmatprep.subr.mxu0 0.0
        %1593 = vmatpush1.msra.mxu0 0.0
        %1594 = vmatprep.subr.mxu0 0.0
        %1595 = vmatpush1.msra.mxu0 0.0
        %1596 = vmatprep.subr.mxu0 0.0
        %1597 = vmatpush1.msra.mxu0 0.0
        %1598 = vmatprep.subr.mxu0 0.0
        %1599 = vmatpush1.msra.mxu0 0.0
        %1600 = vmatprep.subr.mxu0 0.0
        %1601 = vmatpush1.msra.mxu0 0.0
        %1602 = vmatprep.subr.mxu0 0.0
        %1603 = vmatpush1.msra.mxu0 0.0
        %1604 = vmatprep.subr.mxu0 0.0
        %1605 = vmatpush1.msra.mxu0 0.0
        %1606 = vmatprep.subr.mxu0 0.0
        %1607 = vmatpush1.msra.mxu0 0.0
        %1608 = vmatprep.subr.mxu0 0.0
        %1609 = vmatpush1.msra.mxu0 0.0
        %1610 = vmatprep.subr.mxu0 0.0
        %1611 = vmatpush1.msra.mxu0 0.0
        %1612 = vmatprep.subr.mxu0 0.0
        %1613 = vmatpush1.msra.mxu0 0.0
        %1614 = vmatprep.subr.mxu0 0.0
        %1615 = vmatpush1.msra.mxu0 0.0
        %1616 = vmatprep.subr.mxu0 0.0
        %1617 = vmatpush1.msra.mxu0 0.0
        %1618 = vmatprep.subr.mxu0 0.0
        %1619 = vmatpush1.msra.mxu0 0.0
        %1620 = vmatprep.subr.mxu0 0.0
        %1621 = vmatpush1.msra.mxu0 0.0
        %1622 = vmatprep.subr.mxu0 0.0
        %1623 = vmatpush1.msra.mxu0 0.0
        %1624 = vmatprep.subr.mxu0 0.0
        %1625 = vmatpush1.msra.mxu0 0.0
        %1626 = vmatprep.subr.mxu0 0.0
        %1627 = vmatpush1.msra.mxu0 0.0
        %1628 = vmatprep.subr.mxu0 0.0
        %1629 = vmatpush1.msra.mxu0 0.0
        %1630 = vmatprep.subr.mxu0 0.0
        %1631 = vmatpush1.msra.mxu0 0.0
        %1632 = vmatprep.subr.mxu0 0.0
        %1633 = vmatpush1.msra.mxu0 0.0
        %1634 = vmatprep.subr.mxu0 0.0
        %1635 = vmatpush1.msra.mxu0 0.0
        %1636 = vmatprep.subr.mxu0 0.0
        %1637 = vmatpush1.msra.mxu0 0.0
        %1638 = vmatprep.subr.mxu0 0.0
        %1639 = vmatpush1.msra.mxu0 0.0
        %1640 = vmatprep.subr.mxu0 0.0
        %1641 = vmatpush1.msra.mxu0 0.0
        %1642 = vmatprep.subr.mxu0 0.0
        %1643 = vmatpush1.msra.mxu0 0.0
        %1644 = vmatprep.subr.mxu0 0.0
        %1645 = vmatpush1.msra.mxu0 0.0
        %1646 = vmatprep.subr.mxu0 0.0
        %1647 = vmatpush1.msra.mxu0 0.0
        %1648 = vmatprep.mubr.f32.mxu0 0.0
        %v1649 = vand.u32 %v1328, 4294901760
        %v1650 = vsub.f32 %v1328, %v1649
        %v1651 = vand.u32 %v1650, 4294901760
        %1652 = vmatmul.mubr.f32.gmra.mrb[0].mxu0 %v1651
        %v1653 = vpop.f32.mrb[0].mxu0
        %v1654 = vadd.f32 %v1577, %v1653
        %v1655 = vpop.f32.mrb[0].mxu0
        %1656 = vdwg.mxu0
        %1657 = vmatprep.subr.mxu0 0.0
        %v1658 = vand.u32 %v1322, 4294901760
        %v1659 = vsub.f32 %v1322, %v1658
        %v1660 = vand.u32 %v1659, 4294901760
        %1661 = vmatpush1.msra.mxu0 %v1660
        %1662 = vmatprep.subr.mxu0 0.0
        %v1663 = vand.u32 %v1323, 4294901760
        %v1664 = vsub.f32 %v1323, %v1663
        %v1665 = vand.u32 %v1664, 4294901760
        %1666 = vmatpush1.msra.mxu0 %v1665
        %1667 = vmatprep.subr.mxu0 0.0
        %v1668 = vand.u32 %v1324, 4294901760
        %v1669 = vsub.f32 %v1324, %v1668
        %v1670 = vand.u32 %v1669, 4294901760
        %1671 = vmatpush1.msra.mxu0 %v1670
        %1672 = vmatprep.subr.mxu0 0.0
        %v1673 = vand.u32 %v1325, 4294901760
        %v1674 = vsub.f32 %v1325, %v1673
        %v1675 = vand.u32 %v1674, 4294901760
        %1676 = vmatpush1.msra.mxu0 %v1675
        %1677 = vmatprep.subr.mxu0 0.0
        %1678 = vmatpush1.msra.mxu0 0.0
        %1679 = vmatprep.subr.mxu0 0.0
        %1680 = vmatpush1.msra.mxu0 0.0
        %1681 = vmatprep.subr.mxu0 0.0
        %1682 = vmatpush1.msra.mxu0 0.0
        %1683 = vmatprep.subr.mxu0 0.0
        %1684 = vmatpush1.msra.mxu0 0.0
        %1685 = vmatprep.subr.mxu0 0.0
        %1686 = vmatpush1.msra.mxu0 0.0
        %1687 = vmatprep.subr.mxu0 0.0
        %1688 = vmatpush1.msra.mxu0 0.0
        %1689 = vmatprep.subr.mxu0 0.0
        %1690 = vmatpush1.msra.mxu0 0.0
        %1691 = vmatprep.subr.mxu0 0.0
        %1692 = vmatpush1.msra.mxu0 0.0
        %1693 = vmatprep.subr.mxu0 0.0
        %1694 = vmatpush1.msra.mxu0 0.0
        %1695 = vmatprep.subr.mxu0 0.0
        %1696 = vmatpush1.msra.mxu0 0.0
        %1697 = vmatprep.subr.mxu0 0.0
        %1698 = vmatpush1.msra.mxu0 0.0
        %1699 = vmatprep.subr.mxu0 0.0
        %1700 = vmatpush1.msra.mxu0 0.0
        %1701 = vmatprep.subr.mxu0 0.0
        %1702 = vmatpush1.msra.mxu0 0.0
        %1703 = vmatprep.subr.mxu0 0.0
        %1704 = vmatpush1.msra.mxu0 0.0
        %1705 = vmatprep.subr.mxu0 0.0
        %1706 = vmatpush1.msra.mxu0 0.0
        %1707 = vmatprep.subr.mxu0 0.0
        %1708 = vmatpush1.msra.mxu0 0.0
        %1709 = vmatprep.subr.mxu0 0.0
        %1710 = vmatpush1.msra.mxu0 0.0
        %1711 = vmatprep.subr.mxu0 0.0
        %1712 = vmatpush1.msra.mxu0 0.0
        %1713 = vmatprep.subr.mxu0 0.0
        %1714 = vmatpush1.msra.mxu0 0.0
        %1715 = vmatprep.subr.mxu0 0.0
        %1716 = vmatpush1.msra.mxu0 0.0
        %1717 = vmatprep.subr.mxu0 0.0
        %1718 = vmatpush1.msra.mxu0 0.0
        %1719 = vmatprep.subr.mxu0 0.0
        %1720 = vmatpush1.msra.mxu0 0.0
        %1721 = vmatprep.subr.mxu0 0.0
        %1722 = vmatpush1.msra.mxu0 0.0
        %1723 = vmatprep.subr.mxu0 0.0
        %1724 = vmatpush1.msra.mxu0 0.0
        %1725 = vmatprep.subr.mxu0 0.0
        %1726 = vmatpush1.msra.mxu0 0.0
        %1727 = vmatprep.subr.mxu0 0.0
        %1728 = vmatpush1.msra.mxu0 0.0
        %1729 = vmatprep.subr.mxu0 0.0
        %1730 = vmatpush1.msra.mxu0 0.0
        %1731 = vmatprep.subr.mxu0 0.0
        %1732 = vmatpush1.msra.mxu0 0.0
        %1733 = vmatprep.mubr.f32.mxu0 0.0
        %v1734 = vand.u32 %v1328, 4294901760
        %1735 = vmatmul.mubr.f32.gmra.mrb[0].mxu0 %v1734
        %v1736 = vpop.f32.mrb[0].mxu0
        %v1737 = vadd.f32 %v1654, %v1736
        %v1738 = vpop.f32.mrb[0].mxu0
        %1739 = vdwg.mxu0
        %1740 = vmatprep.subr.mxu0 0.0
        %v1741 = vand.u32 %v1322, 4294901760
        %1742 = vmatpush1.msra.mxu0 %v1741
        %1743 = vmatprep.subr.mxu0 0.0
        %v1744 = vand.u32 %v1323, 4294901760
        %1745 = vmatpush1.msra.mxu0 %v1744
        %1746 = vmatprep.subr.mxu0 0.0
        %v1747 = vand.u32 %v1324, 4294901760
        %1748 = vmatpush1.msra.mxu0 %v1747
        %1749 = vmatprep.subr.mxu0 0.0
        %v1750 = vand.u32 %v1325, 4294901760
        %1751 = vmatpush1.msra.mxu0 %v1750
        %1752 = vmatprep.subr.mxu0 0.0
        %1753 = vmatpush1.msra.mxu0 0.0
        %1754 = vmatprep.subr.mxu0 0.0
        %1755 = vmatpush1.msra.mxu0 0.0
        %1756 = vmatprep.subr.mxu0 0.0
        %1757 = vmatpush1.msra.mxu0 0.0
        %1758 = vmatprep.subr.mxu0 0.0
        %1759 = vmatpush1.msra.mxu0 0.0
        %1760 = vmatprep.subr.mxu0 0.0
        %1761 = vmatpush1.msra.mxu0 0.0
        %1762 = vmatprep.subr.mxu0 0.0
        %1763 = vmatpush1.msra.mxu0 0.0
        %1764 = vmatprep.subr.mxu0 0.0
        %1765 = vmatpush1.msra.mxu0 0.0
        %1766 = vmatprep.subr.mxu0 0.0
        %1767 = vmatpush1.msra.mxu0 0.0
        %1768 = vmatprep.subr.mxu0 0.0
        %1769 = vmatpush1.msra.mxu0 0.0
        %1770 = vmatprep.subr.mxu0 0.0
        %1771 = vmatpush1.msra.mxu0 0.0
        %1772 = vmatprep.subr.mxu0 0.0
        %1773 = vmatpush1.msra.mxu0 0.0
        %1774 = vmatprep.subr.mxu0 0.0
        %1775 = vmatpush1.msra.mxu0 0.0
        %1776 = vmatprep.subr.mxu0 0.0
        %1777 = vmatpush1.msra.mxu0 0.0
        %1778 = vmatprep.subr.mxu0 0.0
        %1779 = vmatpush1.msra.mxu0 0.0
        %1780 = vmatprep.subr.mxu0 0.0
        %1781 = vmatpush1.msra.mxu0 0.0
        %1782 = vmatprep.subr.mxu0 0.0
        %1783 = vmatpush1.msra.mxu0 0.0
        %1784 = vmatprep.subr.mxu0 0.0
        %1785 = vmatpush1.msra.mxu0 0.0
        %1786 = vmatprep.subr.mxu0 0.0
        %1787 = vmatpush1.msra.mxu0 0.0
        %1788 = vmatprep.subr.mxu0 0.0
        %1789 = vmatpush1.msra.mxu0 0.0
        %1790 = vmatprep.subr.mxu0 0.0
        %1791 = vmatpush1.msra.mxu0 0.0
        %1792 = vmatprep.subr.mxu0 0.0
        %1793 = vmatpush1.msra.mxu0 0.0
        %1794 = vmatprep.subr.mxu0 0.0
        %1795 = vmatpush1.msra.mxu0 0.0
        %1796 = vmatprep.subr.mxu0 0.0
        %1797 = vmatpush1.msra.mxu0 0.0
        %1798 = vmatprep.subr.mxu0 0.0
        %1799 = vmatpush1.msra.mxu0 0.0
        %1800 = vmatprep.subr.mxu0 0.0
        %1801 = vmatpush1.msra.mxu0 0.0
        %1802 = vmatprep.subr.mxu0 0.0
        %1803 = vmatpush1.msra.mxu0 0.0
        %1804 = vmatprep.subr.mxu0 0.0
        %1805 = vmatpush1.msra.mxu0 0.0
        %1806 = vmatprep.subr.mxu0 0.0
        %1807 = vmatpush1.msra.mxu0 0.0
        %1808 = vmatprep.mubr.f32.mxu0 0.0
        %v1809 = vand.u32 %v1328, 4294901760
        %1810 = vmatmul.mubr.f32.gmra.mrb[0].mxu0 %v1809
        %v1811 = vpop.f32.mrb[0].mxu0
        %v1812 = vadd.f32 %v1737, %v1811
        %v1813 = vpop.f32.mrb[0].mxu0
        %1814 = vdwg.mxu0
        %v1815 = vadd.f32 %v1319, %v1812
        %v1816 = vxor.u32 %v1815, 2147483648
        %v1817 = vmul.f32 %v1816, 1.442695
        %v1818 = vpow.pop %v1817
        %v1819 = vadd.f32 %v1818, 1.0
        %v1820 = vrcp.pop %v1819
        %v1821 = vmul.f32 1.0, %v1820
        %1823 = vrot.lane.b32.xlu0 %v1821, 96
        %v1824 = vpop.permute.xlu0 %1823
        %v1826 = vmul.f32 %v369, %v1824
        %v1827 = vld [vmem:[%s6] sm:$0xff]
        %v1828 = vld [vmem:[%s6 + $0x8] sm:$0xff]
        %v1829 = vld [vmem:[%s6 + $0x10] sm:$0xff]
        %v1830 = vld [vmem:[%s6 + $0x18] sm:$0xff]
        %v1832 = vsel %vm1326, %v1826, 0
        %1834 = vmatprep.subr.mxu0 0.0
        %v1835 = vand.u32 %v1827, 4294901760
        %1836 = vmatpush1.msra.mxu0 %v1835
        %1837 = vmatprep.subr.mxu0 0.0
        %v1838 = vand.u32 %v1828, 4294901760
        %1839 = vmatpush1.msra.mxu0 %v1838
        %1840 = vmatprep.subr.mxu0 0.0
        %v1841 = vand.u32 %v1829, 4294901760
        %1842 = vmatpush1.msra.mxu0 %v1841
        %1843 = vmatprep.subr.mxu0 0.0
        %v1844 = vand.u32 %v1830, 4294901760
        %1845 = vmatpush1.msra.mxu0 %v1844
        %1846 = vmatprep.subr.mxu0 0.0
        %1847 = vmatpush1.msra.mxu0 0.0
        %1848 = vmatprep.subr.mxu0 0.0
        %1849 = vmatpush1.msra.mxu0 0.0
        %1850 = vmatprep.subr.mxu0 0.0
        %1851 = vmatpush1.msra.mxu0 0.0
        %1852 = vmatprep.subr.mxu0 0.0
        %1853 = vmatpush1.msra.mxu0 0.0
        %1854 = vmatprep.subr.mxu0 0.0
        %1855 = vmatpush1.msra.mxu0 0.0
        %1856 = vmatprep.subr.mxu0 0.0
        %1857 = vmatpush1.msra.mxu0 0.0
        %1858 = vmatprep.subr.mxu0 0.0
        %1859 = vmatpush1.msra.mxu0 0.0
        %1860 = vmatprep.subr.mxu0 0.0
        %1861 = vmatpush1.msra.mxu0 0.0
        %1862 = vmatprep.subr.mxu0 0.0
        %1863 = vmatpush1.msra.mxu0 0.0
        %1864 = vmatprep.subr.mxu0 0.0
        %1865 = vmatpush1.msra.mxu0 0.0
        %1866 = vmatprep.subr.mxu0 0.0
        %1867 = vmatpush1.msra.mxu0 0.0
        %1868 = vmatprep.subr.mxu0 0.0
        %1869 = vmatpush1.msra.mxu0 0.0
        %1870 = vmatprep.subr.mxu0 0.0
        %1871 = vmatpush1.msra.mxu0 0.0
        %1872 = vmatprep.subr.mxu0 0.0
        %1873 = vmatpush1.msra.mxu0 0.0
        %1874 = vmatprep.subr.mxu0 0.0
        %1875 = vmatpush1.msra.mxu0 0.0
        %1876 = vmatprep.subr.mxu0 0.0
        %1877 = vmatpush1.msra.mxu0 0.0
        %1878 = vmatprep.subr.mxu0 0.0
        %1879 = vmatpush1.msra.mxu0 0.0
        %1880 = vmatprep.subr.mxu0 0.0
        %1881 = vmatpush1.msra.mxu0 0.0
        %1882 = vmatprep.subr.mxu0 0.0
        %1883 = vmatpush1.msra.mxu0 0.0
        %1884 = vmatprep.subr.mxu0 0.0
        %1885 = vmatpush1.msra.mxu0 0.0
        %1886 = vmatprep.subr.mxu0 0.0
        %1887 = vmatpush1.msra.mxu0 0.0
        %1888 = vmatprep.subr.mxu0 0.0
        %1889 = vmatpush1.msra.mxu0 0.0
        %1890 = vmatprep.subr.mxu0 0.0
        %1891 = vmatpush1.msra.mxu0 0.0
        %1892 = vmatprep.subr.mxu0 0.0
        %1893 = vmatpush1.msra.mxu0 0.0
        %1894 = vmatprep.subr.mxu0 0.0
        %1895 = vmatpush1.msra.mxu0 0.0
        %1896 = vmatprep.subr.mxu0 0.0
        %1897 = vmatpush1.msra.mxu0 0.0
        %1898 = vmatprep.subr.mxu0 0.0
        %1899 = vmatpush1.msra.mxu0 0.0
        %1900 = vmatprep.subr.mxu0 0.0
        %1901 = vmatpush1.msra.mxu0 0.0
        %1902 = vmatprep.mubr.f32.mxu0 0.0
        %v1903 = vand.u32 %v1832, 4294901760
        %v1904 = vsub.f32 %v1832, %v1903
        %v1905 = vand.u32 %v1904, 4294901760
        %v1906 = vsub.f32 %v1904, %v1905
        %v1907 = vand.u32 %v1906, 4294901760
        %1908 = vmatmul.mubr.f32.gmra.mrb[0].mxu0 %v1907
        %v1909 = vpop.f32.mrb[0].mxu0
        %v1910 = vadd.f32 0.0, %v1909
        %v1911 = vpop.f32.mrb[0].mxu0
        %1912 = vdwg.mxu0
        %1913 = vmatprep.subr.mxu0 0.0
        %v1914 = vand.u32 %v1827, 4294901760
        %v1915 = vsub.f32 %v1827, %v1914
        %v1916 = vand.u32 %v1915, 4294901760
        %v1917 = vsub.f32 %v1915, %v1916
        %v1918 = vand.u32 %v1917, 4294901760
        %1919 = vmatpush1.msra.mxu0 %v1918
        %1920 = vmatprep.subr.mxu0 0.0
        %v1921 = vand.u32 %v1828, 4294901760
        %v1922 = vsub.f32 %v1828, %v1921
        %v1923 = vand.u32 %v1922, 4294901760
        %v1924 = vsub.f32 %v1922, %v1923
        %v1925 = vand.u32 %v1924, 4294901760
        %1926 = vmatpush1.msra.mxu0 %v1925
        %1927 = vmatprep.subr.mxu0 0.0
        %v1928 = vand.u32 %v1829, 4294901760
        %v1929 = vsub.f32 %v1829, %v1928
        %v1930 = vand.u32 %v1929, 4294901760
        %v1931 = vsub.f32 %v1929, %v1930
        %v1932 = vand.u32 %v1931, 4294901760
        %1933 = vmatpush1.msra.mxu0 %v1932
        %1934 = vmatprep.subr.mxu0 0.0
        %v1935 = vand.u32 %v1830, 4294901760
        %v1936 = vsub.f32 %v1830, %v1935
        %v1937 = vand.u32 %v1936, 4294901760
        %v1938 = vsub.f32 %v1936, %v1937
        %v1939 = vand.u32 %v1938, 4294901760
        %1940 = vmatpush1.msra.mxu0 %v1939
        %1941 = vmatprep.subr.mxu0 0.0
        %1942 = vmatpush1.msra.mxu0 0.0
        %1943 = vmatprep.subr.mxu0 0.0
        %1944 = vmatpush1.msra.mxu0 0.0
        %1945 = vmatprep.subr.mxu0 0.0
        %1946 = vmatpush1.msra.mxu0 0.0
        %1947 = vmatprep.subr.mxu0 0.0
        %1948 = vmatpush1.msra.mxu0 0.0
        %1949 = vmatprep.subr.mxu0 0.0
        %1950 = vmatpush1.msra.mxu0 0.0
        %1951 = vmatprep.subr.mxu0 0.0
        %1952 = vmatpush1.msra.mxu0 0.0
        %1953 = vmatprep.subr.mxu0 0.0
        %1954 = vmatpush1.msra.mxu0 0.0
        %1955 = vmatprep.subr.mxu0 0.0
        %1956 = vmatpush1.msra.mxu0 0.0
        %1957 = vmatprep.subr.mxu0 0.0
        %1958 = vmatpush1.msra.mxu0 0.0
        %1959 = vmatprep.subr.mxu0 0.0
        %1960 = vmatpush1.msra.mxu0 0.0
        %1961 = vmatprep.subr.mxu0 0.0
        %1962 = vmatpush1.msra.mxu0 0.0
        %1963 = vmatprep.subr.mxu0 0.0
        %1964 = vmatpush1.msra.mxu0 0.0
        %1965 = vmatprep.subr.mxu0 0.0
        %1966 = vmatpush1.msra.mxu0 0.0
        %1967 = vmatprep.subr.mxu0 0.0
        %1968 = vmatpush1.msra.mxu0 0.0
        %1969 = vmatprep.subr.mxu0 0.0
        %1970 = vmatpush1.msra.mxu0 0.0
        %1971 = vmatprep.subr.mxu0 0.0
        %1972 = vmatpush1.msra.mxu0 0.0
        %1973 = vmatprep.subr.mxu0 0.0
        %1974 = vmatpush1.msra.mxu0 0.0
        %1975 = vmatprep.subr.mxu0 0.0
        %1976 = vmatpush1.msra.mxu0 0.0
        %1977 = vmatprep.subr.mxu0 0.0
        %1978 = vmatpush1.msra.mxu0 0.0
        %1979 = vmatprep.subr.mxu0 0.0
        %1980 = vmatpush1.msra.mxu0 0.0
        %1981 = vmatprep.subr.mxu0 0.0
        %1982 = vmatpush1.msra.mxu0 0.0
        %1983 = vmatprep.subr.mxu0 0.0
        %1984 = vmatpush1.msra.mxu0 0.0
        %1985 = vmatprep.subr.mxu0 0.0
        %1986 = vmatpush1.msra.mxu0 0.0
        %1987 = vmatprep.subr.mxu0 0.0
        %1988 = vmatpush1.msra.mxu0 0.0
        %1989 = vmatprep.subr.mxu0 0.0
        %1990 = vmatpush1.msra.mxu0 0.0
        %1991 = vmatprep.subr.mxu0 0.0
        %1992 = vmatpush1.msra.mxu0 0.0
        %1993 = vmatprep.subr.mxu0 0.0
        %1994 = vmatpush1.msra.mxu0 0.0
        %1995 = vmatprep.subr.mxu0 0.0
        %1996 = vmatpush1.msra.mxu0 0.0
        %1997 = vmatprep.mubr.f32.mxu0 0.0
        %v1998 = vand.u32 %v1832, 4294901760
        %1999 = vmatmul.mubr.f32.gmra.mrb[0].mxu0 %v1998
        %v2000 = vpop.f32.mrb[0].mxu0
        %v2001 = vadd.f32 %v1910, %v2000
        %v2002 = vpop.f32.mrb[0].mxu0
        %2003 = vdwg.mxu0
        %2004 = vmatprep.subr.mxu0 0.0
        %v2005 = vand.u32 %v1827, 4294901760
        %v2006 = vsub.f32 %v1827, %v2005
        %2007 = vmatpush1.msra.mxu0 %v2006
        %2008 = vmatprep.subr.mxu0 0.0
        %v2009 = vand.u32 %v1828, 4294901760
        %v2010 = vsub.f32 %v1828, %v2009
        %2011 = vmatpush1.msra.mxu0 %v2010
        %2012 = vmatprep.subr.mxu0 0.0
        %v2013 = vand.u32 %v1829, 4294901760
        %v2014 = vsub.f32 %v1829, %v2013
        %2015 = vmatpush1.msra.mxu0 %v2014
        %2016 = vmatprep.subr.mxu0 0.0
        %v2017 = vand.u32 %v1830, 4294901760
        %v2018 = vsub.f32 %v1830, %v2017
        %2019 = vmatpush1.msra.mxu0 %v2018
        %2020 = vmatprep.subr.mxu0 0.0
        %2021 = vmatpush1.msra.mxu0 0.0
        %2022 = vmatprep.subr.mxu0 0.0
        %2023 = vmatpush1.msra.mxu0 0.0
        %2024 = vmatprep.subr.mxu0 0.0
        %2025 = vmatpush1.msra.mxu0 0.0
        %2026 = vmatprep.subr.mxu0 0.0
        %2027 = vmatpush1.msra.mxu0 0.0
        %2028 = vmatprep.subr.mxu0 0.0
        %2029 = vmatpush1.msra.mxu0 0.0
        %2030 = vmatprep.subr.mxu0 0.0
        %2031 = vmatpush1.msra.mxu0 0.0
        %2032 = vmatprep.subr.mxu0 0.0
        %2033 = vmatpush1.msra.mxu0 0.0
        %2034 = vmatprep.subr.mxu0 0.0
        %2035 = vmatpush1.msra.mxu0 0.0
        %2036 = vmatprep.subr.mxu0 0.0
        %2037 = vmatpush1.msra.mxu0 0.0
        %2038 = vmatprep.subr.mxu0 0.0
        %2039 = vmatpush1.msra.mxu0 0.0
        %2040 = vmatprep.subr.mxu0 0.0
        %2041 = vmatpush1.msra.mxu0 0.0
        %2042 = vmatprep.subr.mxu0 0.0
        %2043 = vmatpush1.msra.mxu0 0.0
        %2044 = vmatprep.subr.mxu0 0.0
        %2045 = vmatpush1.msra.mxu0 0.0
        %2046 = vmatprep.subr.mxu0 0.0
        %2047 = vmatpush1.msra.mxu0 0.0
        %2048 = vmatprep.subr.mxu0 0.0
        %2049 = vmatpush1.msra.mxu0 0.0
        %2050 = vmatprep.subr.mxu0 0.0
        %2051 = vmatpush1.msra.mxu0 0.0
        %2052 = vmatprep.subr.mxu0 0.0
        %2053 = vmatpush1.msra.mxu0 0.0
        %2054 = vmatprep.subr.mxu0 0.0
        %2055 = vmatpush1.msra.mxu0 0.0
        %2056 = vmatprep.subr.mxu0 0.0
        %2057 = vmatpush1.msra.mxu0 0.0
        %2058 = vmatprep.subr.mxu0 0.0
        %2059 = vmatpush1.msra.mxu0 0.0
        %2060 = vmatprep.subr.mxu0 0.0
        %2061 = vmatpush1.msra.mxu0 0.0
        %2062 = vmatprep.subr.mxu0 0.0
        %2063 = vmatpush1.msra.mxu0 0.0
        %2064 = vmatprep.subr.mxu0 0.0
        %2065 = vmatpush1.msra.mxu0 0.0
        %2066 = vmatprep.subr.mxu0 0.0
        %2067 = vmatpush1.msra.mxu0 0.0
        %2068 = vmatprep.subr.mxu0 0.0
        %2069 = vmatpush1.msra.mxu0 0.0
        %2070 = vmatprep.subr.mxu0 0.0
        %2071 = vmatpush1.msra.mxu0 0.0
        %2072 = vmatprep.subr.mxu0 0.0
        %2073 = vmatpush1.msra.mxu0 0.0
        %2074 = vmatprep.subr.mxu0 0.0
        %2075 = vmatpush1.msra.mxu0 0.0
        %2076 = vmatprep.mubr.f32.mxu0 0.0
        %v2077 = vand.u32 %v1832, 4294901760
        %v2078 = vsub.f32 %v1832, %v2077
        %2079 = vmatmul.mubr.f32.gmra.mrb[0].mxu0 %v2078
        %v2080 = vpop.f32.mrb[0].mxu0
        %v2081 = vadd.f32 %v2001, %v2080
        %v2082 = vpop.f32.mrb[0].mxu0
        %2083 = vdwg.mxu0
        %2084 = vmatprep.subr.mxu0 0.0
        %v2085 = vand.u32 %v1827, 4294901760
        %2086 = vmatpush1.msra.mxu0 %v2085
        %2087 = vmatprep.subr.mxu0 0.0
        %v2088 = vand.u32 %v1828, 4294901760
        %2089 = vmatpush1.msra.mxu0 %v2088
        %2090 = vmatprep.subr.mxu0 0.0
        %v2091 = vand.u32 %v1829, 4294901760
        %2092 = vmatpush1.msra.mxu0 %v2091
        %2093 = vmatprep.subr.mxu0 0.0
        %v2094 = vand.u32 %v1830, 4294901760
        %2095 = vmatpush1.msra.mxu0 %v2094
        %2096 = vmatprep.subr.mxu0 0.0
        %2097 = vmatpush1.msra.mxu0 0.0
        %2098 = vmatprep.subr.mxu0 0.0
        %2099 = vmatpush1.msra.mxu0 0.0
        %2100 = vmatprep.subr.mxu0 0.0
        %2101 = vmatpush1.msra.mxu0 0.0
        %2102 = vmatprep.subr.mxu0 0.0
        %2103 = vmatpush1.msra.mxu0 0.0
        %2104 = vmatprep.subr.mxu0 0.0
        %2105 = vmatpush1.msra.mxu0 0.0
        %2106 = vmatprep.subr.mxu0 0.0
        %2107 = vmatpush1.msra.mxu0 0.0
        %2108 = vmatprep.subr.mxu0 0.0
        %2109 = vmatpush1.msra.mxu0 0.0
        %2110 = vmatprep.subr.mxu0 0.0
        %2111 = vmatpush1.msra.mxu0 0.0
        %2112 = vmatprep.subr.mxu0 0.0
        %2113 = vmatpush1.msra.mxu0 0.0
        %2114 = vmatprep.subr.mxu0 0.0
        %2115 = vmatpush1.msra.mxu0 0.0
        %2116 = vmatprep.subr.mxu0 0.0
        %2117 = vmatpush1.msra.mxu0 0.0
        %2118 = vmatprep.subr.mxu0 0.0
        %2119 = vmatpush1.msra.mxu0 0.0
        %2120 = vmatprep.subr.mxu0 0.0
        %2121 = vmatpush1.msra.mxu0 0.0
        %2122 = vmatprep.subr.mxu0 0.0
        %2123 = vmatpush1.msra.mxu0 0.0
        %2124 = vmatprep.subr.mxu0 0.0
        %2125 = vmatpush1.msra.mxu0 0.0
        %2126 = vmatprep.subr.mxu0 0.0
        %2127 = vmatpush1.msra.mxu0 0.0
        %2128 = vmatprep.subr.mxu0 0.0
        %2129 = vmatpush1.msra.mxu0 0.0
        %2130 = vmatprep.subr.mxu0 0.0
        %2131 = vmatpush1.msra.mxu0 0.0
        %2132 = vmatprep.subr.mxu0 0.0
        %2133 = vmatpush1.msra.mxu0 0.0
        %2134 = vmatprep.subr.mxu0 0.0
        %2135 = vmatpush1.msra.mxu0 0.0
        %2136 = vmatprep.subr.mxu0 0.0
        %2137 = vmatpush1.msra.mxu0 0.0
        %2138 = vmatprep.subr.mxu0 0.0
        %2139 = vmatpush1.msra.mxu0 0.0
        %2140 = vmatprep.subr.mxu0 0.0
        %2141 = vmatpush1.msra.mxu0 0.0
        %2142 = vmatprep.subr.mxu0 0.0
        %2143 = vmatpush1.msra.mxu0 0.0
        %2144 = vmatprep.subr.mxu0 0.0
        %2145 = vmatpush1.msra.mxu0 0.0
        %2146 = vmatprep.subr.mxu0 0.0
        %2147 = vmatpush1.msra.mxu0 0.0
        %2148 = vmatprep.subr.mxu0 0.0
        %2149 = vmatpush1.msra.mxu0 0.0
        %2150 = vmatprep.subr.mxu0 0.0
        %2151 = vmatpush1.msra.mxu0 0.0
        %2152 = vmatprep.mubr.f32.mxu0 0.0
        %v2153 = vand.u32 %v1832, 4294901760
        %v2154 = vsub.f32 %v1832, %v2153
        %v2155 = vand.u32 %v2154, 4294901760
        %2156 = vmatmul.mubr.f32.gmra.mrb[0].mxu0 %v2155
        %v2157 = vpop.f32.mrb[0].mxu0
        %v2158 = vadd.f32 %v2081, %v2157
        %v2159 = vpop.f32.mrb[0].mxu0
        %2160 = vdwg.mxu0
        %2161 = vmatprep.subr.mxu0 0.0
        %v2162 = vand.u32 %v1827, 4294901760
        %v2163 = vsub.f32 %v1827, %v2162
        %v2164 = vand.u32 %v2163, 4294901760
        %2165 = vmatpush1.msra.mxu0 %v2164
        %2166 = vmatprep.subr.mxu0 0.0
        %v2167 = vand.u32 %v1828, 4294901760
        %v2168 = vsub.f32 %v1828, %v2167
        %v2169 = vand.u32 %v2168, 4294901760
        %2170 = vmatpush1.msra.mxu0 %v2169
        %2171 = vmatprep.subr.mxu0 0.0
        %v2172 = vand.u32 %v1829, 4294901760
        %v2173 = vsub.f32 %v1829, %v2172
        %v2174 = vand.u32 %v2173, 4294901760
        %2175 = vmatpush1.msra.mxu0 %v2174
        %2176 = vmatprep.subr.mxu0 0.0
        %v2177 = vand.u32 %v1830, 4294901760
        %v2178 = vsub.f32 %v1830, %v2177
        %v2179 = vand.u32 %v2178, 4294901760
        %2180 = vmatpush1.msra.mxu0 %v2179
        %2181 = vmatprep.subr.mxu0 0.0
        %2182 = vmatpush1.msra.mxu0 0.0
        %2183 = vmatprep.subr.mxu0 0.0
        %2184 = vmatpush1.msra.mxu0 0.0
        %2185 = vmatprep.subr.mxu0 0.0
        %2186 = vmatpush1.msra.mxu0 0.0
        %2187 = vmatprep.subr.mxu0 0.0
        %2188 = vmatpush1.msra.mxu0 0.0
        %2189 = vmatprep.subr.mxu0 0.0
        %2190 = vmatpush1.msra.mxu0 0.0
        %2191 = vmatprep.subr.mxu0 0.0
        %2192 = vmatpush1.msra.mxu0 0.0
        %2193 = vmatprep.subr.mxu0 0.0
        %2194 = vmatpush1.msra.mxu0 0.0
        %2195 = vmatprep.subr.mxu0 0.0
        %2196 = vmatpush1.msra.mxu0 0.0
        %2197 = vmatprep.subr.mxu0 0.0
        %2198 = vmatpush1.msra.mxu0 0.0
        %2199 = vmatprep.subr.mxu0 0.0
        %2200 = vmatpush1.msra.mxu0 0.0
        %2201 = vmatprep.subr.mxu0 0.0
        %2202 = vmatpush1.msra.mxu0 0.0
        %2203 = vmatprep.subr.mxu0 0.0
        %2204 = vmatpush1.msra.mxu0 0.0
        %2205 = vmatprep.subr.mxu0 0.0
        %2206 = vmatpush1.msra.mxu0 0.0
        %2207 = vmatprep.subr.mxu0 0.0
        %2208 = vmatpush1.msra.mxu0 0.0
        %2209 = vmatprep.subr.mxu0 0.0
        %2210 = vmatpush1.msra.mxu0 0.0
        %2211 = vmatprep.subr.mxu0 0.0
        %2212 = vmatpush1.msra.mxu0 0.0
        %2213 = vmatprep.subr.mxu0 0.0
        %2214 = vmatpush1.msra.mxu0 0.0
        %2215 = vmatprep.subr.mxu0 0.0
        %2216 = vmatpush1.msra.mxu0 0.0
        %2217 = vmatprep.subr.mxu0 0.0
        %2218 = vmatpush1.msra.mxu0 0.0
        %2219 = vmatprep.subr.mxu0 0.0
        %2220 = vmatpush1.msra.mxu0 0.0
        %2221 = vmatprep.subr.mxu0 0.0
        %2222 = vmatpush1.msra.mxu0 0.0
        %2223 = vmatprep.subr.mxu0 0.0
        %2224 = vmatpush1.msra.mxu0 0.0
        %2225 = vmatprep.subr.mxu0 0.0
        %2226 = vmatpush1.msra.mxu0 0.0
        %2227 = vmatprep.subr.mxu0 0.0
        %2228 = vmatpush1.msra.mxu0 0.0
        %2229 = vmatprep.subr.mxu0 0.0
        %2230 = vmatpush1.msra.mxu0 0.0
        %2231 = vmatprep.subr.mxu0 0.0
        %2232 = vmatpush1.msra.mxu0 0.0
        %2233 = vmatprep.subr.mxu0 0.0
        %2234 = vmatpush1.msra.mxu0 0.0
        %2235 = vmatprep.subr.mxu0 0.0
        %2236 = vmatpush1.msra.mxu0 0.0
        %2237 = vmatprep.mubr.f32.mxu0 0.0
        %v2238 = vand.u32 %v1832, 4294901760
        %2239 = vmatmul.mubr.f32.gmra.mrb[0].mxu0 %v2238
        %v2240 = vpop.f32.mrb[0].mxu0
        %v2241 = vadd.f32 %v2158, %v2240
        %v2242 = vpop.f32.mrb[0].mxu0
        %2243 = vdwg.mxu0
        %2244 = vmatprep.subr.mxu0 0.0
        %v2245 = vand.u32 %v1827, 4294901760
        %2246 = vmatpush1.msra.mxu0 %v2245
        %2247 = vmatprep.subr.mxu0 0.0
        %v2248 = vand.u32 %v1828, 4294901760
        %2249 = vmatpush1.msra.mxu0 %v2248
        %2250 = vmatprep.subr.mxu0 0.0
        %v2251 = vand.u32 %v1829, 4294901760
        %2252 = vmatpush1.msra.mxu0 %v2251
        %2253 = vmatprep.subr.mxu0 0.0
        %v2254 = vand.u32 %v1830, 4294901760
        %2255 = vmatpush1.msra.mxu0 %v2254
        %2256 = vmatprep.subr.mxu0 0.0
        %2257 = vmatpush1.msra.mxu0 0.0
        %2258 = vmatprep.subr.mxu0 0.0
        %2259 = vmatpush1.msra.mxu0 0.0
        %2260 = vmatprep.subr.mxu0 0.0
        %2261 = vmatpush1.msra.mxu0 0.0
        %2262 = vmatprep.subr.mxu0 0.0
        %2263 = vmatpush1.msra.mxu0 0.0
        %2264 = vmatprep.subr.mxu0 0.0
        %2265 = vmatpush1.msra.mxu0 0.0
        %2266 = vmatprep.subr.mxu0 0.0
        %2267 = vmatpush1.msra.mxu0 0.0
        %2268 = vmatprep.subr.mxu0 0.0
        %2269 = vmatpush1.msra.mxu0 0.0
        %2270 = vmatprep.subr.mxu0 0.0
        %2271 = vmatpush1.msra.mxu0 0.0
        %2272 = vmatprep.subr.mxu0 0.0
        %2273 = vmatpush1.msra.mxu0 0.0
        %2274 = vmatprep.subr.mxu0 0.0
        %2275 = vmatpush1.msra.mxu0 0.0
        %2276 = vmatprep.subr.mxu0 0.0
        %2277 = vmatpush1.msra.mxu0 0.0
        %2278 = vmatprep.subr.mxu0 0.0
        %2279 = vmatpush1.msra.mxu0 0.0
        %2280 = vmatprep.subr.mxu0 0.0
        %2281 = vmatpush1.msra.mxu0 0.0
        %2282 = vmatprep.subr.mxu0 0.0
        %2283 = vmatpush1.msra.mxu0 0.0
        %2284 = vmatprep.subr.mxu0 0.0
        %2285 = vmatpush1.msra.mxu0 0.0
        %2286 = vmatprep.subr.mxu0 0.0
        %2287 = vmatpush1.msra.mxu0 0.0
        %2288 = vmatprep.subr.mxu0 0.0
        %2289 = vmatpush1.msra.mxu0 0.0
        %2290 = vmatprep.subr.mxu0 0.0
        %2291 = vmatpush1.msra.mxu0 0.0
        %2292 = vmatprep.subr.mxu0 0.0
        %2293 = vmatpush1.msra.mxu0 0.0
        %2294 = vmatprep.subr.mxu0 0.0
        %2295 = vmatpush1.msra.mxu0 0.0
        %2296 = vmatprep.subr.mxu0 0.0
        %2297 = vmatpush1.msra.mxu0 0.0
        %2298 = vmatprep.subr.mxu0 0.0
        %2299 = vmatpush1.msra.mxu0 0.0
        %2300 = vmatprep.subr.mxu0 0.0
        %2301 = vmatpush1.msra.mxu0 0.0
        %2302 = vmatprep.subr.mxu0 0.0
        %2303 = vmatpush1.msra.mxu0 0.0
        %2304 = vmatprep.subr.mxu0 0.0
        %2305 = vmatpush1.msra.mxu0 0.0
        %2306 = vmatprep.subr.mxu0 0.0
        %2307 = vmatpush1.msra.mxu0 0.0
        %2308 = vmatprep.subr.mxu0 0.0
        %2309 = vmatpush1.msra.mxu0 0.0
        %2310 = vmatprep.subr.mxu0 0.0
        %2311 = vmatpush1.msra.mxu0 0.0
        %2312 = vmatprep.mubr.f32.mxu0 0.0
        %v2313 = vand.u32 %v1832, 4294901760
        %2314 = vmatmul.mubr.f32.gmra.mrb[0].mxu0 %v2313
        %v2315 = vpop.f32.mrb[0].mxu0
        %v2316 = vadd.f32 %v2241, %v2315
        %v2317 = vpop.f32.mrb[0].mxu0
        %2318 = vdwg.mxu0
        %2320 = vrot.lane.b32.xlu0 %v2316, 64
        %v2321 = vpop.permute.xlu0 %2320
        %v2323 = vadd.f32 %v1319, %v2321
        %v2324 = vtanh.pop %v2323
        %v2325 = vmul.f32 %v1821, %v369
        %v2326 = vsub.f32 1.0, %v1821
        %2328 = vrot.lane.b32.xlu0 %v2324, 64
        %v2329 = vpop.permute.xlu0 %2328
        %v2331 = vmul.f32 %v2326, %v2329
        %v2332 = vadd.f32 %v2325, %v2331
        %2333 = vst.msk [vmem:[%s344] sm:$0xff] %vm1326, %v2332
        %s2334 = sand.u32 %s210, 1
        %s2335 = scalar_lea.sflag [#allocation4], %s2334
        %s2336 = sand.u32 %s210, 1
        %s2337 = smul.addr %s2336, 8
        %s2338 = scalar_lea.vmem [#allocation5], %s2337
        // Predicated region
        $region53: #{tpu_custom_call.1} parent=47 // pred_check
          %p2339 = pneg %p220
        $region54: #{tpu_custom_call.1} parent=47 // pred_check_branch
          %2341 = sbr.rel (%p2339) target = $region56
        $region55: #{tpu_custom_call.1} parent=47 // pred_region
          %s2343 = ssub.s32 128, 128
          %2344 = vsyncadd %s2335, %s2343
          %s2345 = smul.addr %s26, 2
          %s2346 = sadd.s32 %s27, %s2345
          %s2347 = smul.addr %s2346, 128
          %s2348 = scalar_lea.hbm %s7, %s2347
          %s2350 = sshll.u32 %s2338, 4
          %s2351 = int_to_ptr.vmem [resolvable:$true] %s2350
          %2353 = dma.vmem_to_hbm [thread:$0]  %s2351, 128, %s2348, %s2335
        $region56: #{tpu_custom_call.1} parent=47 // pred_fallthru
          _
      $region48: #{tpu_custom_call.1} parent=5 // pred_fallthru
        _
      %p2354 = scmp.le.s32.totalorder 2, %s17
      // Predicated region
      $region57: #{tpu_custom_call.1} parent=5 // pred_check
        %p2355 = pneg %p2354
      $region58: #{tpu_custom_call.1} parent=5 // pred_check_branch
        %2357 = sbr.rel (%p2355) target = $region60
      $region59: #{tpu_custom_call.1} parent=5 // pred_region
        %s2358 = ssub.s32 %s17, 2
        // Predicated region
        $region61: #{tpu_custom_call.1} parent=59 // pred_check
          %p2359 = pneg %p226
        $region62: #{tpu_custom_call.1} parent=59 // pred_check_branch
          %2361 = sbr.rel (%p2359) target = $region64
        $region63: #{tpu_custom_call.1} parent=59 // pred_region
          %s2362 = sand.u32 %s211, 1
          %s2363 = scalar_lea.sflag [#allocation4], %s2362
          %s2364 = sand.u32 %s211, 1
          %s2365 = smul.addr %s2364, 8
          %s2366 = scalar_lea.vmem [#allocation5], %s2365
          %2367 = dma.done %s2363, 128
        $region64: #{tpu_custom_call.1} parent=59 // pred_fallthru
          _
      $region60: #{tpu_custom_call.1} parent=5 // pred_fallthru
        _
    $region6: #{tpu_custom_call.1} parent=1 // loop_footer
      %s21 = sadd.s32 1, %s17
    $region7: #{tpu_custom_call.1} parent=1 // loop_footer_branch
      %16 = sbr.rel target = $region3
    $region8: #{tpu_custom_call.1} parent=1 // loop_exit
      _
    %2368 = vsyncpa [#allocation3], 1
    %s2369 = scalar_lea.sflag [#allocation3], 1
    %2370 = vsyncpa %s2369, 1
    %2371 = vsyncpa [#allocation4], 1
    %s2372 = scalar_lea.sflag [#allocation4], 1
    %2373 = vsyncpa %s2372, 1

</llo_original>
